<compile_context>
chip_gen: v7x
topology: tpu7x:2x2x1
jax: 0.10.0
libtpu: 0.0.40
codegen_flags: <defaults>
</compile_context>

<pallas_src>
import jax
import jax.numpy as jnp
from jax.experimental import pallas as pl
from jax.experimental.pallas import tpu as pltpu


# --------------------------------------------------------------------------
# Kernel
# --------------------------------------------------------------------------
def aux_head_kernel(x_ref, pool_ref, b1_ref, t1_ref, w2_ref, t2_ref,
                    wfc_ref, bfc_ref, out_ref):
    # x_ref: (NBLK, C, 64) -- NCHW with the 8x8 spatial dims flattened to 64.
    x = jnp.maximum(x_ref[...], 0.0)                       # ReLU

    # AvgPool2d(5, stride=3, padding=0) on 8x8 -> 4 windows.  Each window is a
    # masked (1/25-weighted) reduction over the flattened-spatial lane axis;
    # results are concatenated window-major: column index = p*C + c.
    pooled = jnp.concatenate(
        [jnp.sum(x * pool_ref[p][None, None, :], axis=2) for p in range(4)],
        axis=1)                                            # (NBLK, 4*C)

    # Conv2d(C, 128, 1, bias=False) + folded BN1 scale, applied to all 4
    # windows at once via a block-diagonal weight:
    #   h1[n, q*128 + k] = sum_c pooled[n, q*C + c] * w1[c, k] * s1[k]
    h1 = jnp.dot(pooled, b1_ref[...], preferred_element_type=jnp.float32)
    h1 = jnp.maximum(h1 + t1_ref[...], 0.0)                # (NBLK, 512)

    # Conv2d(128, 768, 2, bias=False) on the 2x2 pooled map == one
    # (512 -> 768) matmul (BN2 scale folded into the columns).
    h2 = jnp.dot(h1, w2_ref[...], preferred_element_type=jnp.float32)
    h2 = jnp.maximum(h2 + t2_ref[...], 0.0)                # (NBLK, 768)

    # Linear(768, num_classes); classes zero-padded to a multiple of 128 so the
    # store is a full lane-dense slab.
    out_ref[...] = (jnp.dot(h2, wfc_ref[...],
                            preferred_element_type=jnp.float32)
                    + bfc_ref[...])


# --------------------------------------------------------------------------
# Wrapper
# --------------------------------------------------------------------------
def _choose_nblk(n, c, vmem_budget_bytes=24 << 20):
    """Samples per grid step: a multiple of 8 (dense sublane output blocks),
    double-buffered x tile within a budget that fits v7x's 64 MiB VMEM, and
    >= 2 grid steps when N allows (v7x has 2 TensorCores)."""
    per_sample = c * 64 * 4                     # f32 bytes of x per sample
    nblk = 128
    while nblk > 8 and (2 * nblk * per_sample > vmem_budget_bytes or n <= nblk):
        nblk //= 2
    return nblk


def aux_head_forward(x_nchw, kp):
    """x_nchw: (N, C, 8, 8) float32.  Returns (N, num_classes) float32."""
    n, c, h, w = x_nchw.shape
    assert h == 8 and w == 8, "AuxiliaryHeadCIFAR assumes 8x8 input"
    num_classes = kp["num_classes"]
    ncp = kp["bfc"].shape[-1]                   # padded class count (mult of 128)

    nblk = _choose_nblk(n, c)
    n_pad = (-n) % nblk

    # Minor-dim flatten only (NCHW order preserved, no transpose).
    x = x_nchw.reshape(n, c, 64)
    if n_pad:
        x = jnp.pad(x, ((0, n_pad), (0, 0), (0, 0)))
    n_tot = n + n_pad

    out = pl.pallas_call(
        aux_head_kernel,
        out_shape=jax.ShapeDtypeStruct((n_tot, ncp), jnp.float32),
        grid=(n_tot // nblk,),
        in_specs=[
            pl.BlockSpec((nblk, c, 64), lambda i: (i, 0, 0)),   # x (NCHW, flat spatial)
            pl.BlockSpec((4, 64), lambda i: (0, 0)),            # avg-pool masks
            pl.BlockSpec((4 * c, 512), lambda i: (0, 0)),       # conv1 (block-diag, BN1 folded)
            pl.BlockSpec((1, 512), lambda i: (0, 0)),           # BN1 shift (tiled over windows)
            pl.BlockSpec((512, 768), lambda i: (0, 0)),         # conv2 (BN2 folded)
            pl.BlockSpec((1, 768), lambda i: (0, 0)),           # BN2 shift
            pl.BlockSpec((768, ncp), lambda i: (0, 0)),         # fc weight (padded)
            pl.BlockSpec((1, ncp), lambda i: (0, 0)),           # fc bias (padded)
        ],
        out_specs=pl.BlockSpec((nblk, ncp), lambda i: (i, 0)),
        compiler_params=pltpu.CompilerParams(
            dimension_semantics=("parallel",),
            vmem_limit_bytes=48 * 1024 * 1024),
    )(x, kp["pool"], kp["b1"], kp["t1"], kp["w2"], kp["t2"],
      kp["wfc"], kp["bfc"])

    return out[:n, :num_classes]


# --------------------------------------------------------------------------
# Parameter construction (PyTorch-shaped raw params -> kernel layouts)
# --------------------------------------------------------------------------
def _pool_matrix():
    """(4, 64) masks implementing AvgPool2d(5, stride=3, padding=0) on 8x8.
    Row p = i*2 + j holds 1/25 over the 5x5 window starting at (3i, 3j)."""
    m = [[0.0] * 64 for _ in range(4)]
    for i in range(2):
        for j in range(2):
            p = i * 2 + j
            for hh in range(3 * i, 3 * i + 5):
                for ww in range(3 * j, 3 * j + 5):
                    m[p][hh * 8 + ww] = 1.0 / 25.0
    return jnp.array(m, dtype=jnp.float32)


def make_raw_params(key, C, num_classes):
    ks = jax.random.split(key, 12)
    return {
        "w1": 0.1 * jax.random.normal(ks[0], (128, C, 1, 1), jnp.float32),
        "w2": 0.05 * jax.random.normal(ks[1], (768, 128, 2, 2), jnp.float32),
        "wfc": 0.05 * jax.random.normal(ks[2], (num_classes, 768), jnp.float32),
        "bfc": 0.1 * jax.random.normal(ks[3], (num_classes,), jnp.float32),
        "g1": 1.0 + 0.1 * jax.random.normal(ks[4], (128,), jnp.float32),
        "b1": 0.1 * jax.random.normal(ks[5], (128,), jnp.float32),
        "m1": 0.1 * jax.random.normal(ks[6], (128,), jnp.float32),
        "v1": 0.5 + jnp.abs(jax.random.normal(ks[7], (128,), jnp.float32)),
        "g2": 1.0 + 0.1 * jax.random.normal(ks[8], (768,), jnp.float32),
        "b2": 0.1 * jax.random.normal(ks[9], (768,), jnp.float32),
        "m2": 0.1 * jax.random.normal(ks[10], (768,), jnp.float32),
        "v2": 0.5 + jnp.abs(jax.random.normal(ks[11], (768,), jnp.float32)),
    }


def prepare_kernel_params(raw, eps=1e-5):
    C = raw["w1"].shape[1]
    num_classes = raw["wfc"].shape[0]
    ncp = ((num_classes + 127) // 128) * 128

    s1 = raw["g1"] / jnp.sqrt(raw["v1"] + eps)
    t1 = raw["b1"] - raw["m1"] * s1
    s2 = raw["g2"] / jnp.sqrt(raw["v2"] + eps)
    t2 = raw["b2"] - raw["m2"] * s2

    # conv1 1x1: (128, C, 1, 1) -> (C, 128) with BN1 scale folded per out
    # channel, replicated block-diagonally over the 4 pooled positions:
    #   B1[p*C + c, q*128 + k] = (p == q) * w1[c, k] * s1[k]
    w1s = jnp.transpose(raw["w1"].reshape(128, C), (1, 0)) * s1[None, :]
    b1 = jnp.einsum("pq,ck->pcqk", jnp.eye(4, dtype=jnp.float32), w1s)
    b1 = b1.reshape(4 * C, 4 * 128)

    # conv2 2x2: (768, 128, 2, 2) -> (kh, kw, cin, cout) -> (512, 768),
    # row index = (kh*2 + kw)*128 + cin; BN2 scale folded per out channel.
    w2 = jnp.transpose(raw["w2"], (2, 3, 1, 0)).reshape(4 * 128, 768)
    w2 = w2 * s2[None, :]

    # classifier, zero-padded to a lane-dense multiple of 128 classes.
    wfc = jnp.zeros((768, ncp), jnp.float32).at[:, :num_classes].set(
        jnp.transpose(raw["wfc"], (1, 0)))
    bfc = jnp.zeros((1, ncp), jnp.float32).at[0, :num_classes].set(raw["bfc"])

    return {
        "pool": _pool_matrix(),
        "b1": b1,
        "t1": jnp.tile(t1, 4).reshape(1, 512),     # BN1 shift for every window
        "w2": w2,
        "t2": t2.reshape(1, 768),
        "wfc": wfc,
        "bfc": bfc,
        "num_classes": num_classes,
    }


# --------------------------------------------------------------------------
# Plain-JAX reference (same eval-mode BN semantics), built from raw params
# --------------------------------------------------------------------------
def ref_forward(x_nchw, raw, eps=1e-5):
    C = raw["w1"].shape[1]
    s1 = raw["g1"] / jnp.sqrt(raw["v1"] + eps)
    t1 = raw["b1"] - raw["m1"] * s1
    s2 = raw["g2"] / jnp.sqrt(raw["v2"] + eps)
    t2 = raw["b2"] - raw["m2"] * s2

    x = jnp.maximum(x_nchw, 0.0)
    rows = []
    for i in range(2):
        cols = []
        for j in range(2):
            cols.append(x[:, :, 3 * i:3 * i + 5, 3 * j:3 * j + 5]
                        .mean(axis=(2, 3)))                    # (N, C)
        rows.append(jnp.stack(cols, axis=-1))                  # (N, C, 2)
    pooled = jnp.stack(rows, axis=-2)                          # (N, C, 2, 2)

    h1 = jnp.einsum("ncij,kc->nkij", pooled, raw["w1"].reshape(128, C))
    h1 = jnp.maximum(h1 * s1[None, :, None, None]
                     + t1[None, :, None, None], 0.0)
    h2 = jnp.einsum("nkij,okij->no", h1, raw["w2"])
    h2 = jnp.maximum(h2 * s2[None, :] + t2[None, :], 0.0)
    return h2 @ raw["wfc"].T + raw["bfc"][None, :]


# --------------------------------------------------------------------------
if __name__ == "__main__":
    key = jax.random.PRNGKey(0)
    k_x, k_p = jax.random.split(key)

    N, C, num_classes = 16, 16, 10
    x = jax.random.normal(k_x, (N, C, 8, 8), jnp.float32)

    raw = make_raw_params(k_p, C, num_classes)
    kparams = prepare_kernel_params(raw)

    out = jax.block_until_ready(aux_head_forward(x, kparams))
    ref = jax.block_until_ready(ref_forward(x, raw))

    assert out.shape == (N, num_classes)
    assert jnp.allclose(out, ref, atol=1e-3, rtol=1e-3), (
        f"max abs diff {jnp.max(jnp.abs(out - ref))}")

    print("KERNEL_OK")
</pallas_src>

<mosaic_0001>
module attributes {stable_mosaic.version = 11 : i64} {
  func.func @aux_head_kernel(%arg0: i32, %arg1: memref<8x16x64xf32, #tpu.memory_space<vmem>>, %arg2: memref<4x64xf32, #tpu.memory_space<vmem>>, %arg3: memref<64x512xf32, #tpu.memory_space<vmem>>, %arg4: memref<1x512xf32, #tpu.memory_space<vmem>>, %arg5: memref<512x768xf32, #tpu.memory_space<vmem>>, %arg6: memref<1x768xf32, #tpu.memory_space<vmem>>, %arg7: memref<768x128xf32, #tpu.memory_space<vmem>>, %arg8: memref<1x128xf32, #tpu.memory_space<vmem>>, %arg9: memref<8x128xf32, #tpu.memory_space<vmem>>) attributes {dimension_semantics = [#tpu.dimension_semantics<parallel>], iteration_bounds = array<i64: 2>, scalar_prefetch = 0 : i64, scratch_operands = 0 : i64, tpu.core_type = #tpu.core_type<tc>, window_params = [{transform_indices = @transform_0, window_bounds = array<i64: 8, 16, 64>}, {pipeline_mode = #tpu.pipeline_mode<synchronous>, transform_indices = @transform_1, window_bounds = array<i64: 4, 64>}, {pipeline_mode = #tpu.pipeline_mode<synchronous>, transform_indices = @transform_2, window_bounds = array<i64: 64, 512>}, {pipeline_mode = #tpu.pipeline_mode<synchronous>, transform_indices = @transform_3, window_bounds = array<i64: 1, 512>}, {pipeline_mode = #tpu.pipeline_mode<synchronous>, transform_indices = @transform_4, window_bounds = array<i64: 512, 768>}, {pipeline_mode = #tpu.pipeline_mode<synchronous>, transform_indices = @transform_5, window_bounds = array<i64: 1, 768>}, {pipeline_mode = #tpu.pipeline_mode<synchronous>, transform_indices = @transform_6, window_bounds = array<i64: 768, 128>}, {pipeline_mode = #tpu.pipeline_mode<synchronous>, transform_indices = @transform_7, window_bounds = array<i64: 1, 128>}, {transform_indices = @transform_8, window_bounds = array<i64: 8, 128>}]} {
    %c0 = arith.constant 0 : index
    %c0_0 = arith.constant 0 : index
    %c0_1 = arith.constant 0 : index
    %0 = vector.load %arg1[%c0, %c0_0, %c0_1] : memref<8x16x64xf32, #tpu.memory_space<vmem>>, vector<8x16x64xf32>
    %cst = arith.constant 0.000000e+00 : f32
    %1 = vector.broadcast %cst : f32 to vector<8x16x64xf32>
    %2 = arith.maximumf %0, %1 : vector<8x16x64xf32>
    %c0_2 = arith.constant 0 : index
    %c0_3 = arith.constant 0 : index
    %3 = vector.load %arg2[%c0_2, %c0_3] : memref<4x64xf32, #tpu.memory_space<vmem>>, vector<1x64xf32>
    %4 = vector.shape_cast %3 : vector<1x64xf32> to vector<64xf32>
    %5 = vector.shape_cast %4 : vector<64xf32> to vector<1x1x64xf32>
    %6 = vector.broadcast %5 : vector<1x1x64xf32> to vector<8x16x64xf32>
    %7 = arith.mulf %2, %6 : vector<8x16x64xf32>
    %cst_4 = arith.constant dense<0.000000e+00> : vector<8x16xf32>
    %8 = vector.multi_reduction <add>, %7, %cst_4 [2] : vector<8x16x64xf32> to vector<8x16xf32>
    %c1 = arith.constant 1 : index
    %c0_5 = arith.constant 0 : index
    %9 = vector.load %arg2[%c1, %c0_5] : memref<4x64xf32, #tpu.memory_space<vmem>>, vector<1x64xf32>
    %10 = vector.shape_cast %9 : vector<1x64xf32> to vector<64xf32>
    %11 = vector.shape_cast %10 : vector<64xf32> to vector<1x1x64xf32>
    %12 = vector.broadcast %11 : vector<1x1x64xf32> to vector<8x16x64xf32>
    %13 = arith.mulf %2, %12 : vector<8x16x64xf32>
    %cst_6 = arith.constant dense<0.000000e+00> : vector<8x16xf32>
    %14 = vector.multi_reduction <add>, %13, %cst_6 [2] : vector<8x16x64xf32> to vector<8x16xf32>
    %c2 = arith.constant 2 : index
    %c0_7 = arith.constant 0 : index
    %15 = vector.load %arg2[%c2, %c0_7] : memref<4x64xf32, #tpu.memory_space<vmem>>, vector<1x64xf32>
    %16 = vector.shape_cast %15 : vector<1x64xf32> to vector<64xf32>
    %17 = vector.shape_cast %16 : vector<64xf32> to vector<1x1x64xf32>
    %18 = vector.broadcast %17 : vector<1x1x64xf32> to vector<8x16x64xf32>
    %19 = arith.mulf %2, %18 : vector<8x16x64xf32>
    %cst_8 = arith.constant dense<0.000000e+00> : vector<8x16xf32>
    %20 = vector.multi_reduction <add>, %19, %cst_8 [2] : vector<8x16x64xf32> to vector<8x16xf32>
    %c3 = arith.constant 3 : index
    %c0_9 = arith.constant 0 : index
    %21 = vector.load %arg2[%c3, %c0_9] : memref<4x64xf32, #tpu.memory_space<vmem>>, vector<1x64xf32>
    %22 = vector.shape_cast %21 : vector<1x64xf32> to vector<64xf32>
    %23 = vector.shape_cast %22 : vector<64xf32> to vector<1x1x64xf32>
    %24 = vector.broadcast %23 : vector<1x1x64xf32> to vector<8x16x64xf32>
    %25 = arith.mulf %2, %24 : vector<8x16x64xf32>
    %cst_10 = arith.constant dense<0.000000e+00> : vector<8x16xf32>
    %26 = vector.multi_reduction <add>, %25, %cst_10 [2] : vector<8x16x64xf32> to vector<8x16xf32>
    %27 = tpu.concatenate %8, %14, %20, %26 in 1 : vector<8x16xf32>, vector<8x16xf32>, vector<8x16xf32>, vector<8x16xf32> -> vector<8x64xf32>
    %c0_11 = arith.constant 0 : index
    %c0_12 = arith.constant 0 : index
    %28 = vector.load %arg3[%c0_11, %c0_12] : memref<64x512xf32, #tpu.memory_space<vmem>>, vector<64x512xf32>
    %cst_13 = arith.constant dense<0.000000e+00> : vector<8x512xf32>
    %29 = tpu.matmul %27, %28, %cst_13 {dimension_numbers = #tpu.dot_dimension_numbers<[1], [0], [0], [1], [0, 0, 1, 1], [], []>} : vector<8x64xf32>, vector<64x512xf32>, vector<8x512xf32> -> vector<8x512xf32>
    %c0_14 = arith.constant 0 : index
    %c0_15 = arith.constant 0 : index
    %30 = vector.load %arg4[%c0_14, %c0_15] : memref<1x512xf32, #tpu.memory_space<vmem>>, vector<1x512xf32>
    %31 = vector.broadcast %30 : vector<1x512xf32> to vector<8x512xf32>
    %32 = arith.addf %29, %31 : vector<8x512xf32>
    %cst_16 = arith.constant 0.000000e+00 : f32
    %33 = vector.broadcast %cst_16 : f32 to vector<8x512xf32>
    %34 = arith.maximumf %32, %33 : vector<8x512xf32>
    %c0_17 = arith.constant 0 : index
    %c0_18 = arith.constant 0 : index
    %35 = vector.load %arg5[%c0_17, %c0_18] : memref<512x768xf32, #tpu.memory_space<vmem>>, vector<512x768xf32>
    %cst_19 = arith.constant dense<0.000000e+00> : vector<8x768xf32>
    %36 = tpu.matmul %34, %35, %cst_19 {dimension_numbers = #tpu.dot_dimension_numbers<[1], [0], [0], [1], [0, 0, 1, 1], [], []>} : vector<8x512xf32>, vector<512x768xf32>, vector<8x768xf32> -> vector<8x768xf32>
    %c0_20 = arith.constant 0 : index
    %c0_21 = arith.constant 0 : index
    %37 = vector.load %arg6[%c0_20, %c0_21] : memref<1x768xf32, #tpu.memory_space<vmem>>, vector<1x768xf32>
    %38 = vector.broadcast %37 : vector<1x768xf32> to vector<8x768xf32>
    %39 = arith.addf %36, %38 : vector<8x768xf32>
    %cst_22 = arith.constant 0.000000e+00 : f32
    %40 = vector.broadcast %cst_22 : f32 to vector<8x768xf32>
    %41 = arith.maximumf %39, %40 : vector<8x768xf32>
    %c0_23 = arith.constant 0 : index
    %c0_24 = arith.constant 0 : index
    %42 = vector.load %arg7[%c0_23, %c0_24] : memref<768x128xf32, #tpu.memory_space<vmem>>, vector<768x128xf32>
    %cst_25 = arith.constant dense<0.000000e+00> : vector<8x128xf32>
    %43 = tpu.matmul %41, %42, %cst_25 {dimension_numbers = #tpu.dot_dimension_numbers<[1], [0], [0], [1], [0, 0, 1, 1], [], []>} : vector<8x768xf32>, vector<768x128xf32>, vector<8x128xf32> -> vector<8x128xf32>
    %c0_26 = arith.constant 0 : index
    %c0_27 = arith.constant 0 : index
    %44 = vector.load %arg8[%c0_26, %c0_27] : memref<1x128xf32, #tpu.memory_space<vmem>>, vector<1x128xf32>
    %45 = vector.broadcast %44 : vector<1x128xf32> to vector<8x128xf32>
    %46 = arith.addf %43, %45 : vector<8x128xf32>
    %c0_28 = arith.constant 0 : index
    %c0_29 = arith.constant 0 : index
    %47 = vector.load %arg9[%c0_28, %c0_29] : memref<8x128xf32, #tpu.memory_space<vmem>>, vector<8x128xf32>
    tpu.vector_store %arg9[%c0_28, %c0_29], %46 {strides = array<i32>} : memref<8x128xf32, #tpu.memory_space<vmem>>, vector<8x128xf32>,
    return
  }
  func.func @transform_0(%arg0: i32) -> (i32, i32, i32) {
    %c0_i32 = arith.constant 0 : i32
    %c0_i32_0 = arith.constant 0 : i32
    %c0_i32_1 = arith.constant 0 : i32
    return %arg0, %c0_i32, %c0_i32_0 : i32, i32, i32
  }
  func.func @transform_1(%arg0: i32) -> (i32, i32) {
    %c0_i32 = arith.constant 0 : i32
    %c0_i32_0 = arith.constant 0 : i32
    %c0_i32_1 = arith.constant 0 : i32
    return %c0_i32, %c0_i32_0 : i32, i32
  }
  func.func @transform_2(%arg0: i32) -> (i32, i32) {
    %c0_i32 = arith.constant 0 : i32
    %c0_i32_0 = arith.constant 0 : i32
    %c0_i32_1 = arith.constant 0 : i32
    return %c0_i32, %c0_i32_0 : i32, i32
  }
  func.func @transform_3(%arg0: i32) -> (i32, i32) {
    %c0_i32 = arith.constant 0 : i32
    %c0_i32_0 = arith.constant 0 : i32
    %c0_i32_1 = arith.constant 0 : i32
    return %c0_i32, %c0_i32_0 : i32, i32
  }
  func.func @transform_4(%arg0: i32) -> (i32, i32) {
    %c0_i32 = arith.constant 0 : i32
    %c0_i32_0 = arith.constant 0 : i32
    %c0_i32_1 = arith.constant 0 : i32
    return %c0_i32, %c0_i32_0 : i32, i32
  }
  func.func @transform_5(%arg0: i32) -> (i32, i32) {
    %c0_i32 = arith.constant 0 : i32
    %c0_i32_0 = arith.constant 0 : i32
    %c0_i32_1 = arith.constant 0 : i32
    return %c0_i32, %c0_i32_0 : i32, i32
  }
  func.func @transform_6(%arg0: i32) -> (i32, i32) {
    %c0_i32 = arith.constant 0 : i32
    %c0_i32_0 = arith.constant 0 : i32
    %c0_i32_1 = arith.constant 0 : i32
    return %c0_i32, %c0_i32_0 : i32, i32
  }
  func.func @transform_7(%arg0: i32) -> (i32, i32) {
    %c0_i32 = arith.constant 0 : i32
    %c0_i32_0 = arith.constant 0 : i32
    %c0_i32_1 = arith.constant 0 : i32
    return %c0_i32, %c0_i32_0 : i32, i32
  }
  func.func @transform_8(%arg0: i32) -> (i32, i32) {
    %c0_i32 = arith.constant 0 : i32
    %c0_i32_0 = arith.constant 0 : i32
    return %arg0, %c0_i32 : i32, i32
  }
}

</mosaic_0001>

<llo_original>
// kernel: tpu_custom_call.1
$region0: #{tpu_custom_call.1}
  #allocation0 [shape = 'u32[]', space=smem, size = 0x4, offset = 0x4, fixed_abs, tag = 'smem constant byte address 0x4 - core index']
  #allocation1 [shape = 'u32[144,128]{1,0:T(1,128)}', space=vmem, size = 0x12000, scoped, tag = 'internal scratch']
  %s0 = inlined_call_operand.hbm [shape: f32[16,16,64], index: 0, kind: input, shape index: {}]
  %s1 = inlined_call_operand.hbm [shape: f32[4,64], index: 1, kind: input, shape index: {}]
  %s2 = inlined_call_operand.hbm [shape: f32[64,512], index: 2, kind: input, shape index: {}]
  %s3 = inlined_call_operand.hbm [shape: f32[1,512], index: 3, kind: input, shape index: {}]
  %s4 = inlined_call_operand.hbm [shape: f32[512,768], index: 4, kind: input, shape index: {}]
  %s5 = inlined_call_operand.hbm [shape: f32[1,768], index: 5, kind: input, shape index: {}]
  %s6 = inlined_call_operand.hbm [shape: f32[768,128], index: 6, kind: input, shape index: {}]
  %s7 = inlined_call_operand.hbm [shape: f32[1,128], index: 7, kind: input, shape index: {}]
  %s8 = inlined_call_operand.hbm [shape: f32[16,128], index: 8, kind: output, shape index: {}]
  %s9 = sld [smem:[#allocation0]]
  $region97: #{tpu_custom_call.1} parent=0
    _
  %s11 = ssub.s32 1, %s9
  %s12 = scalar_select 0, %s11, %s9
  $region1: #{tpu_custom_call.1} parent=0
    #allocation2 [shape = 'u8[131072]{0}', space=vmem, size = 0x20000, scoped, tag = 'input window, operand 0']
    #allocation3 [shape = 's32[2]{0}', space=sflag, size = 0x8, scoped, tag = 'scoped memory for tpu_custom_call.1']
    #allocation4 [shape = 's32[2]{0}', space=sflag, size = 0x8, scoped, tag = 'scoped memory for tpu_custom_call.1']
    #allocation5 [shape = 'u8[2048]{0}', space=vmem, size = 0x800, scoped, tag = 'input window, operand 1, single buffered']
    #allocation6 [shape = 's32[1]{0}', space=sflag, size = 0x4, scoped, tag = 'scoped memory for tpu_custom_call.1']
    #allocation7 [shape = 'u8[131072]{0}', space=vmem, size = 0x20000, scoped, tag = 'input window, operand 2, single buffered']
    #allocation8 [shape = 'u8[2048]{0}', space=vmem, size = 0x800, scoped, tag = 'input window, operand 3, single buffered']
    #allocation9 [shape = 's32[1]{0}', space=sflag, size = 0x4, scoped, tag = 'scoped memory for tpu_custom_call.1']
    #allocation10 [shape = 'u8[1572864]{0}', space=vmem, size = 0x180000, scoped, tag = 'input window, operand 4, single buffered']
    #allocation11 [shape = 'u8[3072]{0}', space=vmem, size = 0xc00, scoped, tag = 'input window, operand 5, single buffered']
    #allocation12 [shape = 's32[1]{0}', space=sflag, size = 0x4, scoped, tag = 'scoped memory for tpu_custom_call.1']
    #allocation13 [shape = 'u8[393216]{0}', space=vmem, size = 0x60000, scoped, tag = 'input window, operand 6, single buffered']
    #allocation14 [shape = 'u8[512]{0}', space=vmem, size = 0x400, scoped, tag = 'input window, operand 7, single buffered']
    #allocation15 [shape = 's32[1]{0}', space=sflag, size = 0x4, scoped, tag = 'scoped memory for tpu_custom_call.1']
    #allocation16 [shape = 'u8[8192]{0}', space=vmem, size = 0x2000, scoped, tag = 'output window, operand 0']
    %13 = vsyncpa [#allocation3], 0
    %s14 = scalar_lea.sflag [#allocation3], 1
    %15 = vsyncpa %s14, 0
    %16 = vsyncpa [#allocation6], 0
    %17 = vsyncpa [#allocation9], 0
    %18 = vsyncpa [#allocation12], 0
    %19 = vsyncpa [#allocation15], 0
    %20 = vsyncpa [#allocation4], 0
    %s21 = scalar_lea.sflag [#allocation4], 1
    %22 = vsyncpa %s21, 0
    loop: start=0, step=1, limit=4
    $region2: #{tpu_custom_call.1} parent=1 // loop_pre_header
      _
    $region3: #{tpu_custom_call.1} parent=1 // loop_header
      %s24 = sphi 0, %s28
      %p25 = scmp.ge.s32.totalorder %s24, 4
      %s34 = sphi 0, %s36
      %s37 = sphi 0, %s34
      %s38 = sphi 0, %s37
      %s54 = sphi 0, %s38
      %s58 = sphi 0, %s58
      %s60 = sphi 0, %s58
      %s61 = sphi 0, %s60
      %s75 = sphi 0, %s61
      %s79 = sphi 0, %s79
      %s81 = sphi 0, %s79
      %s82 = sphi 0, %s81
      %s96 = sphi 0, %s82
      %s100 = sphi 0, %s100
      %s102 = sphi 0, %s100
      %s103 = sphi 0, %s102
      %s117 = sphi 0, %s103
      %s121 = sphi 0, %s121
      %s123 = sphi 0, %s121
      %s124 = sphi 0, %s123
      %s138 = sphi 0, %s124
      %s142 = sphi 0, %s142
      %s144 = sphi 0, %s142
      %s145 = sphi 0, %s144
      %s159 = sphi 0, %s145
      %s163 = sphi 0, %s163
      %s165 = sphi 0, %s163
      %s166 = sphi 0, %s165
      %s180 = sphi 0, %s166
      %s184 = sphi 0, %s184
      %s186 = sphi 0, %s184
      %s187 = sphi 0, %s186
      %s201 = sphi 0, %s187
      %s207 = sphi 0, %s209
      %s210 = sphi 0, %s207
      %s211 = sphi 0, %s210
      %s227 = sphi 0, %s211
    $region4: #{tpu_custom_call.1} parent=1 // loop_header_branch
      %27 = sbr.rel (%p25) target = $region8
    $region5: #{tpu_custom_call.1} parent=1 // loop_body
      %s29 = ssub.s32 %s24, 1
      %s30 = ssub.s32 %s24, 2
      %s31 = sadd.s32 %s24, 1
      %s32 = ssub.s32 %s24, %s31
      %p33 = scmp.eq.s32.totalorder %s32, 0
      %s35 = sadd.s32 %s34, 1
      %s36 = scalar_select %p33, %s34, %s35
      %p39 = pneg %p33
      %p40 = scmp.eq.s32.totalorder %s24, 1
      %p41 = por %p39, %p40
      %p42 = scmp.ne.s32.totalorder %s34, %s37
      %p43 = scmp.eq.s32.totalorder %s24, 0
      %p44 = por %p42, %p43
      %p45 = scmp.ne.s32.totalorder %s34, %s37
      %p46 = scmp.eq.s32.totalorder %s29, 1
      %p47 = por %p45, %p46
      %p48 = scmp.ne.s32.totalorder %s37, %s38
      %p49 = scmp.eq.s32.totalorder %s29, 0
      %p50 = por %p48, %p49
      %p51 = scmp.ne.s32.totalorder %s37, %s38
      %p52 = scmp.eq.s32.totalorder %s30, 1
      %p53 = por %p51, %p52
      %p55 = scmp.ne.s32.totalorder %s38, %s54
      %p56 = scmp.eq.s32.totalorder %s30, 0
      %p57 = por %p55, %p56
      %s59 = sadd.s32 %s58, 1
      %p62 = scmp.eq.s32.totalorder %s24, 1
      %p63 = scmp.ne.s32.totalorder %s58, %s60
      %p64 = scmp.eq.s32.totalorder %s24, 0
      %p65 = por %p63, %p64
      %p66 = scmp.ne.s32.totalorder %s58, %s60
      %p67 = scmp.eq.s32.totalorder %s29, 1
      %p68 = por %p66, %p67
      %p69 = scmp.ne.s32.totalorder %s60, %s61
      %p70 = scmp.eq.s32.totalorder %s29, 0
      %p71 = por %p69, %p70
      %p72 = scmp.ne.s32.totalorder %s60, %s61
      %p73 = scmp.eq.s32.totalorder %s30, 1
      %p74 = por %p72, %p73
      %p76 = scmp.ne.s32.totalorder %s61, %s75
      %p77 = scmp.eq.s32.totalorder %s30, 0
      %p78 = por %p76, %p77
      %s80 = sadd.s32 %s79, 1
      %p83 = scmp.eq.s32.totalorder %s24, 1
      %p84 = scmp.ne.s32.totalorder %s79, %s81
      %p85 = scmp.eq.s32.totalorder %s24, 0
      %p86 = por %p84, %p85
      %p87 = scmp.ne.s32.totalorder %s79, %s81
      %p88 = scmp.eq.s32.totalorder %s29, 1
      %p89 = por %p87, %p88
      %p90 = scmp.ne.s32.totalorder %s81, %s82
      %p91 = scmp.eq.s32.totalorder %s29, 0
      %p92 = por %p90, %p91
      %p93 = scmp.ne.s32.totalorder %s81, %s82
      %p94 = scmp.eq.s32.totalorder %s30, 1
      %p95 = por %p93, %p94
      %p97 = scmp.ne.s32.totalorder %s82, %s96
      %p98 = scmp.eq.s32.totalorder %s30, 0
      %p99 = por %p97, %p98
      %s101 = sadd.s32 %s100, 1
      %p104 = scmp.eq.s32.totalorder %s24, 1
      %p105 = scmp.ne.s32.totalorder %s100, %s102
      %p106 = scmp.eq.s32.totalorder %s24, 0
      %p107 = por %p105, %p106
      %p108 = scmp.ne.s32.totalorder %s100, %s102
      %p109 = scmp.eq.s32.totalorder %s29, 1
      %p110 = por %p108, %p109
      %p111 = scmp.ne.s32.totalorder %s102, %s103
      %p112 = scmp.eq.s32.totalorder %s29, 0
      %p113 = por %p111, %p112
      %p114 = scmp.ne.s32.totalorder %s102, %s103
      %p115 = scmp.eq.s32.totalorder %s30, 1
      %p116 = por %p114, %p115
      %p118 = scmp.ne.s32.totalorder %s103, %s117
      %p119 = scmp.eq.s32.totalorder %s30, 0
      %p120 = por %p118, %p119
      %s122 = sadd.s32 %s121, 1
      %p125 = scmp.eq.s32.totalorder %s24, 1
      %p126 = scmp.ne.s32.totalorder %s121, %s123
      %p127 = scmp.eq.s32.totalorder %s24, 0
      %p128 = por %p126, %p127
      %p129 = scmp.ne.s32.totalorder %s121, %s123
      %p130 = scmp.eq.s32.totalorder %s29, 1
      %p131 = por %p129, %p130
      %p132 = scmp.ne.s32.totalorder %s123, %s124
      %p133 = scmp.eq.s32.totalorder %s29, 0
      %p134 = por %p132, %p133
      %p135 = scmp.ne.s32.totalorder %s123, %s124
      %p136 = scmp.eq.s32.totalorder %s30, 1
      %p137 = por %p135, %p136
      %p139 = scmp.ne.s32.totalorder %s124, %s138
      %p140 = scmp.eq.s32.totalorder %s30, 0
      %p141 = por %p139, %p140
      %s143 = sadd.s32 %s142, 1
      %p146 = scmp.eq.s32.totalorder %s24, 1
      %p147 = scmp.ne.s32.totalorder %s142, %s144
      %p148 = scmp.eq.s32.totalorder %s24, 0
      %p149 = por %p147, %p148
      %p150 = scmp.ne.s32.totalorder %s142, %s144
      %p151 = scmp.eq.s32.totalorder %s29, 1
      %p152 = por %p150, %p151
      %p153 = scmp.ne.s32.totalorder %s144, %s145
      %p154 = scmp.eq.s32.totalorder %s29, 0
      %p155 = por %p153, %p154
      %p156 = scmp.ne.s32.totalorder %s144, %s145
      %p157 = scmp.eq.s32.totalorder %s30, 1
      %p158 = por %p156, %p157
      %p160 = scmp.ne.s32.totalorder %s145, %s159
      %p161 = scmp.eq.s32.totalorder %s30, 0
      %p162 = por %p160, %p161
      %s164 = sadd.s32 %s163, 1
      %p167 = scmp.eq.s32.totalorder %s24, 1
      %p168 = scmp.ne.s32.totalorder %s163, %s165
      %p169 = scmp.eq.s32.totalorder %s24, 0
      %p170 = por %p168, %p169
      %p171 = scmp.ne.s32.totalorder %s163, %s165
      %p172 = scmp.eq.s32.totalorder %s29, 1
      %p173 = por %p171, %p172
      %p174 = scmp.ne.s32.totalorder %s165, %s166
      %p175 = scmp.eq.s32.totalorder %s29, 0
      %p176 = por %p174, %p175
      %p177 = scmp.ne.s32.totalorder %s165, %s166
      %p178 = scmp.eq.s32.totalorder %s30, 1
      %p179 = por %p177, %p178
      %p181 = scmp.ne.s32.totalorder %s166, %s180
      %p182 = scmp.eq.s32.totalorder %s30, 0
      %p183 = por %p181, %p182
      %s185 = sadd.s32 %s184, 1
      %p188 = scmp.eq.s32.totalorder %s24, 1
      %p189 = scmp.ne.s32.totalorder %s184, %s186
      %p190 = scmp.eq.s32.totalorder %s24, 0
      %p191 = por %p189, %p190
      %p192 = scmp.ne.s32.totalorder %s184, %s186
      %p193 = scmp.eq.s32.totalorder %s29, 1
      %p194 = por %p192, %p193
      %p195 = scmp.ne.s32.totalorder %s186, %s187
      %p196 = scmp.eq.s32.totalorder %s29, 0
      %p197 = por %p195, %p196
      %p198 = scmp.ne.s32.totalorder %s186, %s187
      %p199 = scmp.eq.s32.totalorder %s30, 1
      %p200 = por %p198, %p199
      %p202 = scmp.ne.s32.totalorder %s187, %s201
      %p203 = scmp.eq.s32.totalorder %s30, 0
      %p204 = por %p202, %p203
      %s205 = ssub.s32 %s24, %s31
      %p206 = scmp.eq.s32.totalorder %s205, 0
      %s208 = sadd.s32 %s207, 1
      %s209 = scalar_select %p206, %s207, %s208
      %p212 = pneg %p206
      %p213 = scmp.eq.s32.totalorder %s24, 1
      %p214 = por %p212, %p213
      %p215 = scmp.ne.s32.totalorder %s207, %s210
      %p216 = scmp.eq.s32.totalorder %s24, 0
      %p217 = por %p215, %p216
      %p218 = scmp.ne.s32.totalorder %s207, %s210
      %p219 = scmp.eq.s32.totalorder %s29, 1
      %p220 = por %p218, %p219
      %p221 = scmp.ne.s32.totalorder %s210, %s211
      %p222 = scmp.eq.s32.totalorder %s29, 0
      %p223 = por %p221, %p222
      %p224 = scmp.ne.s32.totalorder %s210, %s211
      %p225 = scmp.eq.s32.totalorder %s30, 1
      %p226 = por %p224, %p225
      %p228 = scmp.ne.s32.totalorder %s211, %s227
      %p229 = scmp.eq.s32.totalorder %s30, 0
      %p230 = por %p228, %p229
      %p231 = scmp.le.s32.totalorder 1, %s24
      %p232 = scmp.lt.s32.totalorder %s24, 3
      %p233 = pnand %p231, %p232
      %p234 = pneg %p233
      // Predicated region
      $region9: #{tpu_custom_call.1} parent=5 // pred_check
        _
      $region10: #{tpu_custom_call.1} parent=5 // pred_check_branch
        %236 = sbr.rel (%p233) target = $region12
      $region11: #{tpu_custom_call.1} parent=5 // pred_region
        %s237 = ssub.s32 %s24, 1
        // Predicated region
        $region13: #{tpu_custom_call.1} parent=11 // pred_check
          %p238 = pneg %p71
        $region14: #{tpu_custom_call.1} parent=11 // pred_check_branch
          %240 = sbr.rel (%p238) target = $region16
        $region15: #{tpu_custom_call.1} parent=11 // pred_region
          %s242 = ssub.s32 64, 64
          %243 = vsyncadd [#allocation6], %s242
          %s245 = sshll.u32 [#allocation5], 4
          %s246 = int_to_ptr.vmem [resolvable:$true] %s245
          %248 = dma.hbm_to_vmem [thread:$0]  %s1, 64, %s246, [#allocation6]
        $region16: #{tpu_custom_call.1} parent=11 // pred_fallthru
          _
        // Predicated region
        $region17: #{tpu_custom_call.1} parent=11 // pred_check
          %p249 = pneg %p92
        $region18: #{tpu_custom_call.1} parent=11 // pred_check_branch
          %251 = sbr.rel (%p249) target = $region20
        $region19: #{tpu_custom_call.1} parent=11 // pred_region
          %s253 = ssub.s32 4096, 4096
          %254 = vsyncadd [#allocation6], %s253
          %s255 = sshll.u32 [#allocation7], 4
          %s256 = int_to_ptr.vmem [resolvable:$true] %s255
          %261 = dma.hbm_to_vmem [thread:$0]  %s2, 4096, %s256, [#allocation6], 512, 512, 32
        $region20: #{tpu_custom_call.1} parent=11 // pred_fallthru
          _
        // Predicated region
        $region21: #{tpu_custom_call.1} parent=11 // pred_check
          %p262 = pneg %p113
        $region22: #{tpu_custom_call.1} parent=11 // pred_check_branch
          %264 = sbr.rel (%p262) target = $region24
        $region23: #{tpu_custom_call.1} parent=11 // pred_region
          %s266 = ssub.s32 64, 64
          %267 = vsyncadd [#allocation9], %s266
          %s269 = sshll.u32 [#allocation8], 4
          %s270 = int_to_ptr.vmem [resolvable:$true] %s269
          %272 = dma.hbm_to_vmem [thread:$0]  %s3, 64, %s270, [#allocation9]
        $region24: #{tpu_custom_call.1} parent=11 // pred_fallthru
          _
        // Predicated region
        $region25: #{tpu_custom_call.1} parent=11 // pred_check
          %p273 = pneg %p134
        $region26: #{tpu_custom_call.1} parent=11 // pred_check_branch
          %275 = sbr.rel (%p273) target = $region28
        $region27: #{tpu_custom_call.1} parent=11 // pred_region
          %s277 = ssub.s32 49152, 49152
          %278 = vsyncadd [#allocation9], %s277
          %s279 = sshll.u32 [#allocation10], 4
          %s280 = int_to_ptr.vmem [resolvable:$true] %s279
          %285 = dma.hbm_to_vmem [thread:$0]  %s4, 49152, %s280, [#allocation9], 768, 768, 48
        $region28: #{tpu_custom_call.1} parent=11 // pred_fallthru
          _
        // Predicated region
        $region29: #{tpu_custom_call.1} parent=11 // pred_check
          %p286 = pneg %p155
        $region30: #{tpu_custom_call.1} parent=11 // pred_check_branch
          %288 = sbr.rel (%p286) target = $region32
        $region31: #{tpu_custom_call.1} parent=11 // pred_region
          %s290 = ssub.s32 96, 96
          %291 = vsyncadd [#allocation12], %s290
          %s293 = sshll.u32 [#allocation11], 4
          %s294 = int_to_ptr.vmem [resolvable:$true] %s293
          %296 = dma.hbm_to_vmem [thread:$0]  %s5, 96, %s294, [#allocation12]
        $region32: #{tpu_custom_call.1} parent=11 // pred_fallthru
          _
        // Predicated region
        $region33: #{tpu_custom_call.1} parent=11 // pred_check
          %p297 = pneg %p176
        $region34: #{tpu_custom_call.1} parent=11 // pred_check_branch
          %299 = sbr.rel (%p297) target = $region36
        $region35: #{tpu_custom_call.1} parent=11 // pred_region
          %s301 = ssub.s32 12288, 12288
          %302 = vsyncadd [#allocation12], %s301
          %s303 = sshll.u32 [#allocation13], 4
          %s304 = int_to_ptr.vmem [resolvable:$true] %s303
          %309 = dma.hbm_to_vmem [thread:$0]  %s6, 12288, %s304, [#allocation12], 128, 128, 8
        $region36: #{tpu_custom_call.1} parent=11 // pred_fallthru
          _
        // Predicated region
        $region37: #{tpu_custom_call.1} parent=11 // pred_check
          %p310 = pneg %p197
        $region38: #{tpu_custom_call.1} parent=11 // pred_check_branch
          %312 = sbr.rel (%p310) target = $region40
        $region39: #{tpu_custom_call.1} parent=11 // pred_region
          %s314 = ssub.s32 16, 16
          %315 = vsyncadd [#allocation15], %s314
          %s317 = sshll.u32 [#allocation14], 4
          %s318 = int_to_ptr.vmem [resolvable:$true] %s317
          %320 = dma.hbm_to_vmem [thread:$0]  %s7, 16, %s318, [#allocation15]
        $region40: #{tpu_custom_call.1} parent=11 // pred_fallthru
          _
      $region12: #{tpu_custom_call.1} parent=5 // pred_fallthru
        _
      %p321 = scmp.lt.s32.totalorder %s24, 2
      // Predicated region
      $region41: #{tpu_custom_call.1} parent=5 // pred_check
        %p322 = pneg %p321
      $region42: #{tpu_custom_call.1} parent=5 // pred_check_branch
        %324 = sbr.rel (%p322) target = $region44
      $region43: #{tpu_custom_call.1} parent=5 // pred_region
        // Predicated region
        $region45: #{tpu_custom_call.1} parent=43 // pred_check
          %p325 = pneg %p44
        $region46: #{tpu_custom_call.1} parent=43 // pred_check_branch
          %327 = sbr.rel (%p325) target = $region48
        $region47: #{tpu_custom_call.1} parent=43 // pred_region
          %s328 = sand.u32 %s34, 1
          %s329 = scalar_lea.sflag [#allocation3], %s328
          %s330 = sand.u32 %s34, 1
          %s331 = smul.addr %s330, 128
          %s332 = scalar_lea.vmem [#allocation2], %s331
          %s333 = smul.u32 8, %s24
          %s335 = ssub.s32 2048, 2048
          %336 = vsyncadd %s329, %s335
          %s337 = smul.addr %s333, 2
          %s338 = smul.addr %s337, 128
          %s339 = scalar_lea.hbm %s0, %s338
          %s340 = sshll.u32 %s332, 4
          %s341 = int_to_ptr.vmem [resolvable:$true] %s340
          %346 = dma.hbm_to_vmem [thread:$0]  %s339, 2048, %s341, %s329, 128, 128, 8
        $region48: #{tpu_custom_call.1} parent=43 // pred_fallthru
          _
      $region44: #{tpu_custom_call.1} parent=5 // pred_fallthru
        _
      %p347 = scmp.le.s32.totalorder 1, %s24
      %p348 = scmp.lt.s32.totalorder %s24, 3
      %p349 = pnand %p347, %p348
      %p350 = pneg %p349
      // Predicated region
      $region49: #{tpu_custom_call.1} parent=5 // pred_check
        _
      $region50: #{tpu_custom_call.1} parent=5 // pred_check_branch
        %352 = sbr.rel (%p349) target = $region52
      $region51: #{tpu_custom_call.1} parent=5 // pred_region
        %s353 = ssub.s32 %s24, 1
        %s354 = sand.u32 %s37, 1
        %s355 = scalar_lea.sflag [#allocation3], %s354
        %s356 = sand.u32 %s37, 1
        %s357 = smul.addr %s356, 128
        %s358 = scalar_lea.vmem [#allocation2], %s357
        // Predicated region
        $region53: #{tpu_custom_call.1} parent=51 // pred_check
          %p359 = pneg %p50
        $region54: #{tpu_custom_call.1} parent=51 // pred_check_branch
          %361 = sbr.rel (%p359) target = $region56
        $region55: #{tpu_custom_call.1} parent=51 // pred_region
          %362 = dma.done %s355, 2048
        $region56: #{tpu_custom_call.1} parent=51 // pred_fallthru
          _
        // Predicated region
        $region57: #{tpu_custom_call.1} parent=51 // pred_check
          %p363 = pneg %p71
        $region58: #{tpu_custom_call.1} parent=51 // pred_check_branch
          %365 = sbr.rel (%p363) target = $region60
        $region59: #{tpu_custom_call.1} parent=51 // pred_region
          %366 = dma.done [#allocation6], 64
        $region60: #{tpu_custom_call.1} parent=51 // pred_fallthru
          _
        // Predicated region
        $region61: #{tpu_custom_call.1} parent=51 // pred_check
          %p367 = pneg %p92
        $region62: #{tpu_custom_call.1} parent=51 // pred_check_branch
          %369 = sbr.rel (%p367) target = $region64
        $region63: #{tpu_custom_call.1} parent=51 // pred_region
          %370 = dma.done [#allocation6], 4096
        $region64: #{tpu_custom_call.1} parent=51 // pred_fallthru
          _
        // Predicated region
        $region65: #{tpu_custom_call.1} parent=51 // pred_check
          %p371 = pneg %p113
        $region66: #{tpu_custom_call.1} parent=51 // pred_check_branch
          %373 = sbr.rel (%p371) target = $region68
        $region67: #{tpu_custom_call.1} parent=51 // pred_region
          %374 = dma.done [#allocation9], 64
        $region68: #{tpu_custom_call.1} parent=51 // pred_fallthru
          _
        // Predicated region
        $region69: #{tpu_custom_call.1} parent=51 // pred_check
          %p375 = pneg %p134
        $region70: #{tpu_custom_call.1} parent=51 // pred_check_branch
          %377 = sbr.rel (%p375) target = $region72
        $region71: #{tpu_custom_call.1} parent=51 // pred_region
          %378 = dma.done [#allocation9], 49152
        $region72: #{tpu_custom_call.1} parent=51 // pred_fallthru
          _
        // Predicated region
        $region73: #{tpu_custom_call.1} parent=51 // pred_check
          %p379 = pneg %p155
        $region74: #{tpu_custom_call.1} parent=51 // pred_check_branch
          %381 = sbr.rel (%p379) target = $region76
        $region75: #{tpu_custom_call.1} parent=51 // pred_region
          %382 = dma.done [#allocation12], 96
        $region76: #{tpu_custom_call.1} parent=51 // pred_fallthru
          _
        // Predicated region
        $region77: #{tpu_custom_call.1} parent=51 // pred_check
          %p383 = pneg %p176
        $region78: #{tpu_custom_call.1} parent=51 // pred_check_branch
          %385 = sbr.rel (%p383) target = $region80
        $region79: #{tpu_custom_call.1} parent=51 // pred_region
          %386 = dma.done [#allocation12], 12288
        $region80: #{tpu_custom_call.1} parent=51 // pred_fallthru
          _
        // Predicated region
        $region81: #{tpu_custom_call.1} parent=51 // pred_check
          %p387 = pneg %p197
        $region82: #{tpu_custom_call.1} parent=51 // pred_check_branch
          %389 = sbr.rel (%p387) target = $region84
        $region83: #{tpu_custom_call.1} parent=51 // pred_region
          %390 = dma.done [#allocation15], 16
        $region84: #{tpu_custom_call.1} parent=51 // pred_fallthru
          _
        %s391 = sand.u32 %s37, 1
        %s392 = scalar_lea.sflag [#allocation3], %s391
        %s393 = sand.u32 %s37, 1
        %s394 = smul.addr %s393, 128
        %s395 = scalar_lea.vmem [#allocation2], %s394
        %p396 = pneg %p50
        %p397 = pneg %p47
        %p398 = pneg %p71
        %p399 = pneg %p68
        %p400 = pneg %p92
        %p401 = pneg %p89
        %p402 = pneg %p113
        %p403 = pneg %p110
        %p404 = pneg %p134
        %p405 = pneg %p131
        %p406 = pneg %p155
        %p407 = pneg %p152
        %p408 = pneg %p176
        %p409 = pneg %p173
        %p410 = pneg %p197
        %p411 = pneg %p194
        %p412 = pneg %p223
        %p413 = pneg %p220
        %s414 = sand.u32 %s210, 1
        %s415 = scalar_lea.sflag [#allocation4], %s414
        %s416 = sand.u32 %s210, 1
        %s417 = smul.addr %s416, 8
        %s418 = scalar_lea.vmem [#allocation16], %s417
        %s419 = smul.u32 8, %s29
        %v420 = vld [vmem:[%s358] sm:$0xff]
        %v421 = vld [vmem:[%s358 + $0x8] sm:$0xff]
        %v422 = vld [vmem:[%s358 + $0x10] sm:$0xff]
        %v423 = vld [vmem:[%s358 + $0x18] sm:$0xff]
        %v424 = vld [vmem:[%s358 + $0x20] sm:$0xff]
        %v425 = vld [vmem:[%s358 + $0x28] sm:$0xff]
        %v426 = vld [vmem:[%s358 + $0x30] sm:$0xff]
        %v427 = vld [vmem:[%s358 + $0x38] sm:$0xff]
        %v428 = vld [vmem:[%s358 + $0x40] sm:$0xff]
        %v429 = vld [vmem:[%s358 + $0x48] sm:$0xff]
        %v430 = vld [vmem:[%s358 + $0x50] sm:$0xff]
        %v431 = vld [vmem:[%s358 + $0x58] sm:$0xff]
        %v432 = vld [vmem:[%s358 + $0x60] sm:$0xff]
        %v433 = vld [vmem:[%s358 + $0x68] sm:$0xff]
        %v434 = vld [vmem:[%s358 + $0x70] sm:$0xff]
        %v435 = vld [vmem:[%s358 + $0x78] sm:$0xff]
        %v436 = vmax.f32 %v420, 0.0
        %v437 = vmax.f32 %v421, 0.0
        %v438 = vmax.f32 %v422, 0.0
        %v439 = vmax.f32 %v423, 0.0
        %v440 = vmax.f32 %v424, 0.0
        %v441 = vmax.f32 %v425, 0.0
        %v442 = vmax.f32 %v426, 0.0
        %v443 = vmax.f32 %v427, 0.0
        %v444 = vmax.f32 %v428, 0.0
        %v445 = vmax.f32 %v429, 0.0
        %v446 = vmax.f32 %v430, 0.0
        %v447 = vmax.f32 %v431, 0.0
        %v448 = vmax.f32 %v432, 0.0
        %v449 = vmax.f32 %v433, 0.0
        %v450 = vmax.f32 %v434, 0.0
        %v451 = vmax.f32 %v435, 0.0
        %v452 = vld [vmem:[#allocation5] sm:$0x1]
        %v453 = vlaneseq
        %v454 = vshrl.u32 %v453, 7
        %v455 = vsub.s32 0, %v454
        %v456 = vrot.slane %v452, %v455
        %v457 = vmul.f32 %v436, %v456
        %v458 = vmul.f32 %v437, %v456
        %v459 = vmul.f32 %v438, %v456
        %v460 = vmul.f32 %v439, %v456
        %v461 = vmul.f32 %v440, %v456
        %v462 = vmul.f32 %v441, %v456
        %v463 = vmul.f32 %v442, %v456
        %v464 = vmul.f32 %v443, %v456
        %v465 = vmul.f32 %v444, %v456
        %v466 = vmul.f32 %v445, %v456
        %v467 = vmul.f32 %v446, %v456
        %v468 = vmul.f32 %v447, %v456
        %v469 = vmul.f32 %v448, %v456
        %v470 = vmul.f32 %v449, %v456
        %v471 = vmul.f32 %v450, %v456
        %v472 = vmul.f32 %v451, %v456
        %vm473 = vcmask 523264
        %v474 = vsel %vm473, %v457, 0.0
        %475 = vadd.xlane.f32.xlu0 %v474
        %v476 = vpop.xlane.xlu0 %475
        %v477 = vsel %vm473, %v458, 0.0
        %478 = vadd.xlane.f32.xlu0 %v477
        %v479 = vpop.xlane.xlu0 %478
        %v480 = vsel %vm473, %v459, 0.0
        %481 = vadd.xlane.f32.xlu0 %v480
        %v482 = vpop.xlane.xlu0 %481
        %v483 = vsel %vm473, %v460, 0.0
        %484 = vadd.xlane.f32.xlu0 %v483
        %v485 = vpop.xlane.xlu0 %484
        %v486 = vsel %vm473, %v461, 0.0
        %487 = vadd.xlane.f32.xlu0 %v486
        %v488 = vpop.xlane.xlu0 %487
        %v489 = vsel %vm473, %v462, 0.0
        %490 = vadd.xlane.f32.xlu0 %v489
        %v491 = vpop.xlane.xlu0 %490
        %v492 = vsel %vm473, %v463, 0.0
        %493 = vadd.xlane.f32.xlu0 %v492
        %v494 = vpop.xlane.xlu0 %493
        %v495 = vsel %vm473, %v464, 0.0
        %496 = vadd.xlane.f32.xlu0 %v495
        %v497 = vpop.xlane.xlu0 %496
        %v498 = vsel %vm473, %v465, 0.0
        %499 = vadd.xlane.f32.xlu0 %v498
        %v500 = vpop.xlane.xlu0 %499
        %v501 = vsel %vm473, %v466, 0.0
        %502 = vadd.xlane.f32.xlu0 %v501
        %v503 = vpop.xlane.xlu0 %502
        %v504 = vsel %vm473, %v467, 0.0
        %505 = vadd.xlane.f32.xlu0 %v504
        %v506 = vpop.xlane.xlu0 %505
        %v507 = vsel %vm473, %v468, 0.0
        %508 = vadd.xlane.f32.xlu0 %v507
        %v509 = vpop.xlane.xlu0 %508
        %v510 = vsel %vm473, %v469, 0.0
        %511 = vadd.xlane.f32.xlu0 %v510
        %v512 = vpop.xlane.xlu0 %511
        %v513 = vsel %vm473, %v470, 0.0
        %514 = vadd.xlane.f32.xlu0 %v513
        %v515 = vpop.xlane.xlu0 %514
        %v516 = vsel %vm473, %v471, 0.0
        %517 = vadd.xlane.f32.xlu0 %v516
        %v518 = vpop.xlane.xlu0 %517
        %v519 = vsel %vm473, %v472, 0.0
        %520 = vadd.xlane.f32.xlu0 %v519
        %v521 = vpop.xlane.xlu0 %520
        %v522 = vld [vmem:[#allocation5 + $0x1] sm:$0x1]
        %v523 = vlaneseq
        %v524 = vshrl.u32 %v523, 7
        %v525 = vsub.s32 0, %v524
        %v526 = vrot.slane %v522, %v525
        %v527 = vmul.f32 %v436, %v526
        %v528 = vmul.f32 %v437, %v526
        %v529 = vmul.f32 %v438, %v526
        %v530 = vmul.f32 %v439, %v526
        %v531 = vmul.f32 %v440, %v526
        %v532 = vmul.f32 %v441, %v526
        %v533 = vmul.f32 %v442, %v526
        %v534 = vmul.f32 %v443, %v526
        %v535 = vmul.f32 %v444, %v526
        %v536 = vmul.f32 %v445, %v526
        %v537 = vmul.f32 %v446, %v526
        %v538 = vmul.f32 %v447, %v526
        %v539 = vmul.f32 %v448, %v526
        %v540 = vmul.f32 %v449, %v526
        %v541 = vmul.f32 %v450, %v526
        %v542 = vmul.f32 %v451, %v526
        %v543 = vsel %vm473, %v527, 0.0
        %544 = vadd.xlane.f32.xlu0 %v543
        %v545 = vpop.xlane.xlu0 %544
        %v546 = vsel %vm473, %v528, 0.0
        %547 = vadd.xlane.f32.xlu0 %v546
        %v548 = vpop.xlane.xlu0 %547
        %v549 = vsel %vm473, %v529, 0.0
        %550 = vadd.xlane.f32.xlu0 %v549
        %v551 = vpop.xlane.xlu0 %550
        %v552 = vsel %vm473, %v530, 0.0
        %553 = vadd.xlane.f32.xlu0 %v552
        %v554 = vpop.xlane.xlu0 %553
        %v555 = vsel %vm473, %v531, 0.0
        %556 = vadd.xlane.f32.xlu0 %v555
        %v557 = vpop.xlane.xlu0 %556
        %v558 = vsel %vm473, %v532, 0.0
        %559 = vadd.xlane.f32.xlu0 %v558
        %v560 = vpop.xlane.xlu0 %559
        %v561 = vsel %vm473, %v533, 0.0
        %562 = vadd.xlane.f32.xlu0 %v561
        %v563 = vpop.xlane.xlu0 %562
        %v564 = vsel %vm473, %v534, 0.0
        %565 = vadd.xlane.f32.xlu0 %v564
        %v566 = vpop.xlane.xlu0 %565
        %v567 = vsel %vm473, %v535, 0.0
        %568 = vadd.xlane.f32.xlu0 %v567
        %v569 = vpop.xlane.xlu0 %568
        %v570 = vsel %vm473, %v536, 0.0
        %571 = vadd.xlane.f32.xlu0 %v570
        %v572 = vpop.xlane.xlu0 %571
        %v573 = vsel %vm473, %v537, 0.0
        %574 = vadd.xlane.f32.xlu0 %v573
        %v575 = vpop.xlane.xlu0 %574
        %v576 = vsel %vm473, %v538, 0.0
        %577 = vadd.xlane.f32.xlu0 %v576
        %v578 = vpop.xlane.xlu0 %577
        %v579 = vsel %vm473, %v539, 0.0
        %580 = vadd.xlane.f32.xlu0 %v579
        %v581 = vpop.xlane.xlu0 %580
        %v582 = vsel %vm473, %v540, 0.0
        %583 = vadd.xlane.f32.xlu0 %v582
        %v584 = vpop.xlane.xlu0 %583
        %v585 = vsel %vm473, %v541, 0.0
        %586 = vadd.xlane.f32.xlu0 %v585
        %v587 = vpop.xlane.xlu0 %586
        %v588 = vsel %vm473, %v542, 0.0
        %589 = vadd.xlane.f32.xlu0 %v588
        %v590 = vpop.xlane.xlu0 %589
        %v591 = vld [vmem:[#allocation5 + $0x2] sm:$0x1]
        %v592 = vlaneseq
        %v593 = vshrl.u32 %v592, 7
        %v594 = vsub.s32 0, %v593
        %v595 = vrot.slane %v591, %v594
        %v596 = vmul.f32 %v436, %v595
        %v597 = vmul.f32 %v437, %v595
        %v598 = vmul.f32 %v438, %v595
        %v599 = vmul.f32 %v439, %v595
        %v600 = vmul.f32 %v440, %v595
        %v601 = vmul.f32 %v441, %v595
        %v602 = vmul.f32 %v442, %v595
        %v603 = vmul.f32 %v443, %v595
        %v604 = vmul.f32 %v444, %v595
        %v605 = vmul.f32 %v445, %v595
        %v606 = vmul.f32 %v446, %v595
        %v607 = vmul.f32 %v447, %v595
        %v608 = vmul.f32 %v448, %v595
        %v609 = vmul.f32 %v449, %v595
        %v610 = vmul.f32 %v450, %v595
        %v611 = vmul.f32 %v451, %v595
        %v612 = vsel %vm473, %v596, 0.0
        %613 = vadd.xlane.f32.xlu0 %v612
        %v614 = vpop.xlane.xlu0 %613
        %v615 = vsel %vm473, %v597, 0.0
        %616 = vadd.xlane.f32.xlu0 %v615
        %v617 = vpop.xlane.xlu0 %616
        %v618 = vsel %vm473, %v598, 0.0
        %619 = vadd.xlane.f32.xlu0 %v618
        %v620 = vpop.xlane.xlu0 %619
        %v621 = vsel %vm473, %v599, 0.0
        %622 = vadd.xlane.f32.xlu0 %v621
        %v623 = vpop.xlane.xlu0 %622
        %v624 = vsel %vm473, %v600, 0.0
        %625 = vadd.xlane.f32.xlu0 %v624
        %v626 = vpop.xlane.xlu0 %625
        %v627 = vsel %vm473, %v601, 0.0
        %628 = vadd.xlane.f32.xlu0 %v627
        %v629 = vpop.xlane.xlu0 %628
        %v630 = vsel %vm473, %v602, 0.0
        %631 = vadd.xlane.f32.xlu0 %v630
        %v632 = vpop.xlane.xlu0 %631
        %v633 = vsel %vm473, %v603, 0.0
        %634 = vadd.xlane.f32.xlu0 %v633
        %v635 = vpop.xlane.xlu0 %634
        %v636 = vsel %vm473, %v604, 0.0
        %637 = vadd.xlane.f32.xlu0 %v636
        %v638 = vpop.xlane.xlu0 %637
        %v639 = vsel %vm473, %v605, 0.0
        %640 = vadd.xlane.f32.xlu0 %v639
        %v641 = vpop.xlane.xlu0 %640
        %v642 = vsel %vm473, %v606, 0.0
        %643 = vadd.xlane.f32.xlu0 %v642
        %v644 = vpop.xlane.xlu0 %643
        %v645 = vsel %vm473, %v607, 0.0
        %646 = vadd.xlane.f32.xlu0 %v645
        %v647 = vpop.xlane.xlu0 %646
        %v648 = vsel %vm473, %v608, 0.0
        %649 = vadd.xlane.f32.xlu0 %v648
        %v650 = vpop.xlane.xlu0 %649
        %v651 = vsel %vm473, %v609, 0.0
        %652 = vadd.xlane.f32.xlu0 %v651
        %v653 = vpop.xlane.xlu0 %652
        %v654 = vsel %vm473, %v610, 0.0
        %655 = vadd.xlane.f32.xlu0 %v654
        %v656 = vpop.xlane.xlu0 %655
        %v657 = vsel %vm473, %v611, 0.0
        %658 = vadd.xlane.f32.xlu0 %v657
        %v659 = vpop.xlane.xlu0 %658
        %v660 = vld [vmem:[#allocation5 + $0x3] sm:$0x1]
        %v661 = vlaneseq
        %v662 = vshrl.u32 %v661, 7
        %v663 = vsub.s32 0, %v662
        %v664 = vrot.slane %v660, %v663
        %v665 = vmul.f32 %v436, %v664
        %v666 = vmul.f32 %v437, %v664
        %v667 = vmul.f32 %v438, %v664
        %v668 = vmul.f32 %v439, %v664
        %v669 = vmul.f32 %v440, %v664
        %v670 = vmul.f32 %v441, %v664
        %v671 = vmul.f32 %v442, %v664
        %v672 = vmul.f32 %v443, %v664
        %v673 = vmul.f32 %v444, %v664
        %v674 = vmul.f32 %v445, %v664
        %v675 = vmul.f32 %v446, %v664
        %v676 = vmul.f32 %v447, %v664
        %v677 = vmul.f32 %v448, %v664
        %v678 = vmul.f32 %v449, %v664
        %v679 = vmul.f32 %v450, %v664
        %v680 = vmul.f32 %v451, %v664
        %v681 = vsel %vm473, %v665, 0.0
        %682 = vadd.xlane.f32.xlu0 %v681
        %v683 = vpop.xlane.xlu0 %682
        %v684 = vsel %vm473, %v666, 0.0
        %685 = vadd.xlane.f32.xlu0 %v684
        %v686 = vpop.xlane.xlu0 %685
        %v687 = vsel %vm473, %v667, 0.0
        %688 = vadd.xlane.f32.xlu0 %v687
        %v689 = vpop.xlane.xlu0 %688
        %v690 = vsel %vm473, %v668, 0.0
        %691 = vadd.xlane.f32.xlu0 %v690
        %v692 = vpop.xlane.xlu0 %691
        %v693 = vsel %vm473, %v669, 0.0
        %694 = vadd.xlane.f32.xlu0 %v693
        %v695 = vpop.xlane.xlu0 %694
        %v696 = vsel %vm473, %v670, 0.0
        %697 = vadd.xlane.f32.xlu0 %v696
        %v698 = vpop.xlane.xlu0 %697
        %v699 = vsel %vm473, %v671, 0.0
        %700 = vadd.xlane.f32.xlu0 %v699
        %v701 = vpop.xlane.xlu0 %700
        %v702 = vsel %vm473, %v672, 0.0
        %703 = vadd.xlane.f32.xlu0 %v702
        %v704 = vpop.xlane.xlu0 %703
        %v705 = vsel %vm473, %v673, 0.0
        %706 = vadd.xlane.f32.xlu0 %v705
        %v707 = vpop.xlane.xlu0 %706
        %v708 = vsel %vm473, %v674, 0.0
        %709 = vadd.xlane.f32.xlu0 %v708
        %v710 = vpop.xlane.xlu0 %709
        %v711 = vsel %vm473, %v675, 0.0
        %712 = vadd.xlane.f32.xlu0 %v711
        %v713 = vpop.xlane.xlu0 %712
        %v714 = vsel %vm473, %v676, 0.0
        %715 = vadd.xlane.f32.xlu0 %v714
        %v716 = vpop.xlane.xlu0 %715
        %v717 = vsel %vm473, %v677, 0.0
        %718 = vadd.xlane.f32.xlu0 %v717
        %v719 = vpop.xlane.xlu0 %718
        %v720 = vsel %vm473, %v678, 0.0
        %721 = vadd.xlane.f32.xlu0 %v720
        %v722 = vpop.xlane.xlu0 %721
        %v723 = vsel %vm473, %v679, 0.0
        %724 = vadd.xlane.f32.xlu0 %v723
        %v725 = vpop.xlane.xlu0 %724
        %v726 = vsel %vm473, %v680, 0.0
        %727 = vadd.xlane.f32.xlu0 %v726
        %v728 = vpop.xlane.xlu0 %727
        %v745 = vlaneseq
        %v746 = vand.u32 %v745, 127
        %v747 = vlaneseq
        %v748 = vshrl.u32 %v747, 7
        %v749 = vsub.s32 %v746, %v748
        %v750 = vrot.slane %v476, %v749
        %v751 = vadd.s32 %v746, 4294967288
        %v752 = vlaneseq
        %v753 = vshrl.u32 %v752, 7
        %v754 = vsub.s32 %v751, %v753
        %v755 = vrot.slane %v479, %v754
        %vm756 = vcmask 130112
        %v757 = vsel %vm756, %v755, %v750
        %v758 = vlaneseq
        %v759 = vshrl.u32 %v758, 7
        %v760 = vsub.s32 %v746, %v759
        %v761 = vrot.slane %v482, %v760
        %v762 = vlaneseq
        %v763 = vshrl.u32 %v762, 7
        %v764 = vsub.s32 %v751, %v763
        %v765 = vrot.slane %v485, %v764
        %v766 = vsel %vm756, %v765, %v761
        %v767 = vlaneseq
        %v768 = vshrl.u32 %v767, 7
        %v769 = vsub.s32 %v746, %v768
        %v770 = vrot.slane %v488, %v769
        %v771 = vlaneseq
        %v772 = vshrl.u32 %v771, 7
        %v773 = vsub.s32 %v751, %v772
        %v774 = vrot.slane %v491, %v773
        %v775 = vsel %vm756, %v774, %v770
        %v776 = vlaneseq
        %v777 = vshrl.u32 %v776, 7
        %v778 = vsub.s32 %v746, %v777
        %v779 = vrot.slane %v494, %v778
        %v780 = vlaneseq
        %v781 = vshrl.u32 %v780, 7
        %v782 = vsub.s32 %v751, %v781
        %v783 = vrot.slane %v497, %v782
        %v784 = vsel %vm756, %v783, %v779
        %v785 = vlaneseq
        %v786 = vshrl.u32 %v785, 7
        %v787 = vsub.s32 %v746, %v786
        %v788 = vrot.slane %v500, %v787
        %v789 = vlaneseq
        %v790 = vshrl.u32 %v789, 7
        %v791 = vsub.s32 %v751, %v790
        %v792 = vrot.slane %v503, %v791
        %v793 = vsel %vm756, %v792, %v788
        %v794 = vlaneseq
        %v795 = vshrl.u32 %v794, 7
        %v796 = vsub.s32 %v746, %v795
        %v797 = vrot.slane %v506, %v796
        %v798 = vlaneseq
        %v799 = vshrl.u32 %v798, 7
        %v800 = vsub.s32 %v751, %v799
        %v801 = vrot.slane %v509, %v800
        %v802 = vsel %vm756, %v801, %v797
        %v803 = vlaneseq
        %v804 = vshrl.u32 %v803, 7
        %v805 = vsub.s32 %v746, %v804
        %v806 = vrot.slane %v512, %v805
        %v807 = vlaneseq
        %v808 = vshrl.u32 %v807, 7
        %v809 = vsub.s32 %v751, %v808
        %v810 = vrot.slane %v515, %v809
        %v811 = vsel %vm756, %v810, %v806
        %v812 = vlaneseq
        %v813 = vshrl.u32 %v812, 7
        %v814 = vsub.s32 %v746, %v813
        %v815 = vrot.slane %v518, %v814
        %v816 = vlaneseq
        %v817 = vshrl.u32 %v816, 7
        %v818 = vsub.s32 %v751, %v817
        %v819 = vrot.slane %v521, %v818
        %v820 = vsel %vm756, %v819, %v815
        %vm821 = vcmask 1041409
        %v822 = vsel %vm821, %v766, %v757
        %vm823 = vcmask 1042434
        %v824 = vsel %vm823, %v775, %v822
        %vm825 = vcmask 1043459
        %v826 = vsel %vm825, %v784, %v824
        %vm827 = vcmask 1044484
        %v828 = vsel %vm827, %v793, %v826
        %vm829 = vcmask 1045509
        %v830 = vsel %vm829, %v802, %v828
        %vm831 = vcmask 1046534
        %v832 = vsel %vm831, %v811, %v830
        %vm833 = vcmask 1047559
        %v834 = vsel %vm833, %v820, %v832
        %v852 = vadd.s32 %v746, 4294967280
        %v853 = vlaneseq
        %v854 = vshrl.u32 %v853, 7
        %v855 = vsub.s32 %v852, %v854
        %v856 = vrot.slane %v545, %v855
        %v857 = vadd.s32 %v746, 4294967272
        %v858 = vlaneseq
        %v859 = vshrl.u32 %v858, 7
        %v860 = vsub.s32 %v857, %v859
        %v861 = vrot.slane %v548, %v860
        %vm862 = vcmask 261312
        %v863 = vsel %vm862, %v861, %v856
        %v864 = vlaneseq
        %v865 = vshrl.u32 %v864, 7
        %v866 = vsub.s32 %v852, %v865
        %v867 = vrot.slane %v551, %v866
        %v868 = vlaneseq
        %v869 = vshrl.u32 %v868, 7
        %v870 = vsub.s32 %v857, %v869
        %v871 = vrot.slane %v554, %v870
        %v872 = vsel %vm862, %v871, %v867
        %v873 = vlaneseq
        %v874 = vshrl.u32 %v873, 7
        %v875 = vsub.s32 %v852, %v874
        %v876 = vrot.slane %v557, %v875
        %v877 = vlaneseq
        %v878 = vshrl.u32 %v877, 7
        %v879 = vsub.s32 %v857, %v878
        %v880 = vrot.slane %v560, %v879
        %v881 = vsel %vm862, %v880, %v876
        %v882 = vlaneseq
        %v883 = vshrl.u32 %v882, 7
        %v884 = vsub.s32 %v852, %v883
        %v885 = vrot.slane %v563, %v884
        %v886 = vlaneseq
        %v887 = vshrl.u32 %v886, 7
        %v888 = vsub.s32 %v857, %v887
        %v889 = vrot.slane %v566, %v888
        %v890 = vsel %vm862, %v889, %v885
        %v891 = vlaneseq
        %v892 = vshrl.u32 %v891, 7
        %v893 = vsub.s32 %v852, %v892
        %v894 = vrot.slane %v569, %v893
        %v895 = vlaneseq
        %v896 = vshrl.u32 %v895, 7
        %v897 = vsub.s32 %v857, %v896
        %v898 = vrot.slane %v572, %v897
        %v899 = vsel %vm862, %v898, %v894
        %v900 = vlaneseq
        %v901 = vshrl.u32 %v900, 7
        %v902 = vsub.s32 %v852, %v901
        %v903 = vrot.slane %v575, %v902
        %v904 = vlaneseq
        %v905 = vshrl.u32 %v904, 7
        %v906 = vsub.s32 %v857, %v905
        %v907 = vrot.slane %v578, %v906
        %v908 = vsel %vm862, %v907, %v903
        %v909 = vlaneseq
        %v910 = vshrl.u32 %v909, 7
        %v911 = vsub.s32 %v852, %v910
        %v912 = vrot.slane %v581, %v911
        %v913 = vlaneseq
        %v914 = vshrl.u32 %v913, 7
        %v915 = vsub.s32 %v857, %v914
        %v916 = vrot.slane %v584, %v915
        %v917 = vsel %vm862, %v916, %v912
        %v918 = vlaneseq
        %v919 = vshrl.u32 %v918, 7
        %v920 = vsub.s32 %v852, %v919
        %v921 = vrot.slane %v587, %v920
        %v922 = vlaneseq
        %v923 = vshrl.u32 %v922, 7
        %v924 = vsub.s32 %v857, %v923
        %v925 = vrot.slane %v590, %v924
        %v926 = vsel %vm862, %v925, %v921
        %v927 = vsel %vm821, %v872, %v863
        %v928 = vsel %vm823, %v881, %v927
        %v929 = vsel %vm825, %v890, %v928
        %v930 = vsel %vm827, %v899, %v929
        %v931 = vsel %vm829, %v908, %v930
        %v932 = vsel %vm831, %v917, %v931
        %v933 = vsel %vm833, %v926, %v932
        %v951 = vadd.s32 %v746, 4294967264
        %v952 = vlaneseq
        %v953 = vshrl.u32 %v952, 7
        %v954 = vsub.s32 %v951, %v953
        %v955 = vrot.slane %v614, %v954
        %v956 = vadd.s32 %v746, 4294967256
        %v957 = vlaneseq
        %v958 = vshrl.u32 %v957, 7
        %v959 = vsub.s32 %v956, %v958
        %v960 = vrot.slane %v617, %v959
        %vm961 = vcmask 392512
        %v962 = vsel %vm961, %v960, %v955
        %v963 = vlaneseq
        %v964 = vshrl.u32 %v963, 7
        %v965 = vsub.s32 %v951, %v964
        %v966 = vrot.slane %v620, %v965
        %v967 = vlaneseq
        %v968 = vshrl.u32 %v967, 7
        %v969 = vsub.s32 %v956, %v968
        %v970 = vrot.slane %v623, %v969
        %v971 = vsel %vm961, %v970, %v966
        %v972 = vlaneseq
        %v973 = vshrl.u32 %v972, 7
        %v974 = vsub.s32 %v951, %v973
        %v975 = vrot.slane %v626, %v974
        %v976 = vlaneseq
        %v977 = vshrl.u32 %v976, 7
        %v978 = vsub.s32 %v956, %v977
        %v979 = vrot.slane %v629, %v978
        %v980 = vsel %vm961, %v979, %v975
        %v981 = vlaneseq
        %v982 = vshrl.u32 %v981, 7
        %v983 = vsub.s32 %v951, %v982
        %v984 = vrot.slane %v632, %v983
        %v985 = vlaneseq
        %v986 = vshrl.u32 %v985, 7
        %v987 = vsub.s32 %v956, %v986
        %v988 = vrot.slane %v635, %v987
        %v989 = vsel %vm961, %v988, %v984
        %v990 = vlaneseq
        %v991 = vshrl.u32 %v990, 7
        %v992 = vsub.s32 %v951, %v991
        %v993 = vrot.slane %v638, %v992
        %v994 = vlaneseq
        %v995 = vshrl.u32 %v994, 7
        %v996 = vsub.s32 %v956, %v995
        %v997 = vrot.slane %v641, %v996
        %v998 = vsel %vm961, %v997, %v993
        %v999 = vlaneseq
        %v1000 = vshrl.u32 %v999, 7
        %v1001 = vsub.s32 %v951, %v1000
        %v1002 = vrot.slane %v644, %v1001
        %v1003 = vlaneseq
        %v1004 = vshrl.u32 %v1003, 7
        %v1005 = vsub.s32 %v956, %v1004
        %v1006 = vrot.slane %v647, %v1005
        %v1007 = vsel %vm961, %v1006, %v1002
        %v1008 = vlaneseq
        %v1009 = vshrl.u32 %v1008, 7
        %v1010 = vsub.s32 %v951, %v1009
        %v1011 = vrot.slane %v650, %v1010
        %v1012 = vlaneseq
        %v1013 = vshrl.u32 %v1012, 7
        %v1014 = vsub.s32 %v956, %v1013
        %v1015 = vrot.slane %v653, %v1014
        %v1016 = vsel %vm961, %v1015, %v1011
        %v1017 = vlaneseq
        %v1018 = vshrl.u32 %v1017, 7
        %v1019 = vsub.s32 %v951, %v1018
        %v1020 = vrot.slane %v656, %v1019
        %v1021 = vlaneseq
        %v1022 = vshrl.u32 %v1021, 7
        %v1023 = vsub.s32 %v956, %v1022
        %v1024 = vrot.slane %v659, %v1023
        %v1025 = vsel %vm961, %v1024, %v1020
        %v1026 = vsel %vm821, %v971, %v962
        %v1027 = vsel %vm823, %v980, %v1026
        %v1028 = vsel %vm825, %v989, %v1027
        %v1029 = vsel %vm827, %v998, %v1028
        %v1030 = vsel %vm829, %v1007, %v1029
        %v1031 = vsel %vm831, %v1016, %v1030
        %v1032 = vsel %vm833, %v1025, %v1031
        %v1050 = vadd.s32 %v746, 4294967248
        %v1051 = vlaneseq
        %v1052 = vshrl.u32 %v1051, 7
        %v1053 = vsub.s32 %v1050, %v1052
        %v1054 = vrot.slane %v683, %v1053
        %v1055 = vadd.s32 %v746, 4294967240
        %v1056 = vlaneseq
        %v1057 = vshrl.u32 %v1056, 7
        %v1058 = vsub.s32 %v1055, %v1057
        %v1059 = vrot.slane %v686, %v1058
        %vm1060 = vcmask 523712
        %v1061 = vsel %vm1060, %v1059, %v1054
        %v1062 = vlaneseq
        %v1063 = vshrl.u32 %v1062, 7
        %v1064 = vsub.s32 %v1050, %v1063
        %v1065 = vrot.slane %v689, %v1064
        %v1066 = vlaneseq
        %v1067 = vshrl.u32 %v1066, 7
        %v1068 = vsub.s32 %v1055, %v1067
        %v1069 = vrot.slane %v692, %v1068
        %v1070 = vsel %vm1060, %v1069, %v1065
        %v1071 = vlaneseq
        %v1072 = vshrl.u32 %v1071, 7
        %v1073 = vsub.s32 %v1050, %v1072
        %v1074 = vrot.slane %v695, %v1073
        %v1075 = vlaneseq
        %v1076 = vshrl.u32 %v1075, 7
        %v1077 = vsub.s32 %v1055, %v1076
        %v1078 = vrot.slane %v698, %v1077
        %v1079 = vsel %vm1060, %v1078, %v1074
        %v1080 = vlaneseq
        %v1081 = vshrl.u32 %v1080, 7
        %v1082 = vsub.s32 %v1050, %v1081
        %v1083 = vrot.slane %v701, %v1082
        %v1084 = vlaneseq
        %v1085 = vshrl.u32 %v1084, 7
        %v1086 = vsub.s32 %v1055, %v1085
        %v1087 = vrot.slane %v704, %v1086
        %v1088 = vsel %vm1060, %v1087, %v1083
        %v1089 = vlaneseq
        %v1090 = vshrl.u32 %v1089, 7
        %v1091 = vsub.s32 %v1050, %v1090
        %v1092 = vrot.slane %v707, %v1091
        %v1093 = vlaneseq
        %v1094 = vshrl.u32 %v1093, 7
        %v1095 = vsub.s32 %v1055, %v1094
        %v1096 = vrot.slane %v710, %v1095
        %v1097 = vsel %vm1060, %v1096, %v1092
        %v1098 = vlaneseq
        %v1099 = vshrl.u32 %v1098, 7
        %v1100 = vsub.s32 %v1050, %v1099
        %v1101 = vrot.slane %v713, %v1100
        %v1102 = vlaneseq
        %v1103 = vshrl.u32 %v1102, 7
        %v1104 = vsub.s32 %v1055, %v1103
        %v1105 = vrot.slane %v716, %v1104
        %v1106 = vsel %vm1060, %v1105, %v1101
        %v1107 = vlaneseq
        %v1108 = vshrl.u32 %v1107, 7
        %v1109 = vsub.s32 %v1050, %v1108
        %v1110 = vrot.slane %v719, %v1109
        %v1111 = vlaneseq
        %v1112 = vshrl.u32 %v1111, 7
        %v1113 = vsub.s32 %v1055, %v1112
        %v1114 = vrot.slane %v722, %v1113
        %v1115 = vsel %vm1060, %v1114, %v1110
        %v1116 = vlaneseq
        %v1117 = vshrl.u32 %v1116, 7
        %v1118 = vsub.s32 %v1050, %v1117
        %v1119 = vrot.slane %v725, %v1118
        %v1120 = vlaneseq
        %v1121 = vshrl.u32 %v1120, 7
        %v1122 = vsub.s32 %v1055, %v1121
        %v1123 = vrot.slane %v728, %v1122
        %v1124 = vsel %vm1060, %v1123, %v1119
        %v1125 = vsel %vm821, %v1070, %v1061
        %v1126 = vsel %vm823, %v1079, %v1125
        %v1127 = vsel %vm825, %v1088, %v1126
        %v1128 = vsel %vm827, %v1097, %v1127
        %v1129 = vsel %vm829, %v1106, %v1128
        %v1130 = vsel %vm831, %v1115, %v1129
        %v1131 = vsel %vm833, %v1124, %v1130
        %vm1133 = vcmask 130048
        %v1134 = vsel %vm1133, %v834, %v933
        %vm1135 = vcmask 261120
        %v1136 = vsel %vm1135, %v1134, %v1032
        %vm1137 = vcmask 392192
        %v1138 = vsel %vm1137, %v1136, %v1131
        %v1139 = vld [vmem:[#allocation7] sm:$0xff]
        %v1140 = vld [vmem:[#allocation7 + $0x8] sm:$0xff]
        %v1141 = vld [vmem:[#allocation7 + $0x10] sm:$0xff]
        %v1142 = vld [vmem:[#allocation7 + $0x18] sm:$0xff]
        %v1143 = vld [vmem:[#allocation7 + $0x20] sm:$0xff]
        %v1144 = vld [vmem:[#allocation7 + $0x28] sm:$0xff]
        %v1145 = vld [vmem:[#allocation7 + $0x30] sm:$0xff]
        %v1146 = vld [vmem:[#allocation7 + $0x38] sm:$0xff]
        %v1147 = vld [vmem:[#allocation7 + $0x40] sm:$0xff]
        %v1148 = vld [vmem:[#allocation7 + $0x48] sm:$0xff]
        %v1149 = vld [vmem:[#allocation7 + $0x50] sm:$0xff]
        %v1150 = vld [vmem:[#allocation7 + $0x58] sm:$0xff]
        %v1151 = vld [vmem:[#allocation7 + $0x60] sm:$0xff]
        %v1152 = vld [vmem:[#allocation7 + $0x68] sm:$0xff]
        %v1153 = vld [vmem:[#allocation7 + $0x70] sm:$0xff]
        %v1154 = vld [vmem:[#allocation7 + $0x78] sm:$0xff]
        %v1155 = vld [vmem:[#allocation7 + $0x80] sm:$0xff]
        %v1156 = vld [vmem:[#allocation7 + $0x88] sm:$0xff]
        %v1157 = vld [vmem:[#allocation7 + $0x90] sm:$0xff]
        %v1158 = vld [vmem:[#allocation7 + $0x98] sm:$0xff]
        %v1159 = vld [vmem:[#allocation7 + $0xa0] sm:$0xff]
        %v1160 = vld [vmem:[#allocation7 + $0xa8] sm:$0xff]
        %v1161 = vld [vmem:[#allocation7 + $0xb0] sm:$0xff]
        %v1162 = vld [vmem:[#allocation7 + $0xb8] sm:$0xff]
        %v1163 = vld [vmem:[#allocation7 + $0xc0] sm:$0xff]
        %v1164 = vld [vmem:[#allocation7 + $0xc8] sm:$0xff]
        %v1165 = vld [vmem:[#allocation7 + $0xd0] sm:$0xff]
        %v1166 = vld [vmem:[#allocation7 + $0xd8] sm:$0xff]
        %v1167 = vld [vmem:[#allocation7 + $0xe0] sm:$0xff]
        %v1168 = vld [vmem:[#allocation7 + $0xe8] sm:$0xff]
        %v1169 = vld [vmem:[#allocation7 + $0xf0] sm:$0xff]
        %v1170 = vld [vmem:[#allocation7 + $0xf8] sm:$0xff]
        %v1171 = vld [vmem:[#allocation8] sm:$0xf]
        %v1173 = vlaneseq
        %v1174 = vshrl.u32 %v1173, 7
        %v1175 = vsub.s32 0, %v1174
        %v1176 = vrot.slane %v1171, %v1175
        %v1177 = vlaneseq
        %v1178 = vshrl.u32 %v1177, 7
        %v1179 = vsub.s32 1, %v1178
        %v1180 = vrot.slane %v1171, %v1179
        %v1181 = vlaneseq
        %v1182 = vshrl.u32 %v1181, 7
        %v1183 = vsub.s32 2, %v1182
        %v1184 = vrot.slane %v1171, %v1183
        %v1185 = vlaneseq
        %v1186 = vshrl.u32 %v1185, 7
        %v1187 = vsub.s32 3, %v1186
        %v1188 = vrot.slane %v1171, %v1187
        %v1194 = vsel %vm473, %v1138, 0
        %1196 = vmatprep.subr.mxu0 %v1140
        %1197 = vmatpush1.msra.mxu0 %v1139
        %1198 = vmatprep.subr.mxu0 %v1144
        %1199 = vmatpush1.msra.mxu0 %v1143
        %1200 = vmatprep.subr.mxu0 %v1148
        %1201 = vmatpush1.msra.mxu0 %v1147
        %1202 = vmatprep.subr.mxu0 %v1152
        %1203 = vmatpush1.msra.mxu0 %v1151
        %1204 = vmatprep.subr.mxu0 %v1156
        %1205 = vmatpush1.msra.mxu0 %v1155
        %1206 = vmatprep.subr.mxu0 %v1160
        %1207 = vmatpush1.msra.mxu0 %v1159
        %1208 = vmatprep.subr.mxu0 %v1164
        %1209 = vmatpush1.msra.mxu0 %v1163
        %1210 = vmatprep.subr.mxu0 %v1168
        %1211 = vmatpush1.msra.mxu0 %v1167
        %1212 = vmatprep.subr.mxu0 0.0
        %1213 = vmatpush1.msra.mxu0 0.0
        %1214 = vmatprep.subr.mxu0 0.0
        %1215 = vmatpush1.msra.mxu0 0.0
        %1216 = vmatprep.subr.mxu0 0.0
        %1217 = vmatpush1.msra.mxu0 0.0
        %1218 = vmatprep.subr.mxu0 0.0
        %1219 = vmatpush1.msra.mxu0 0.0
        %1220 = vmatprep.subr.mxu0 0.0
        %1221 = vmatpush1.msra.mxu0 0.0
        %1222 = vmatprep.subr.mxu0 0.0
        %1223 = vmatpush1.msra.mxu0 0.0
        %1224 = vmatprep.subr.mxu0 0.0
        %1225 = vmatpush1.msra.mxu0 0.0
        %1226 = vmatprep.subr.mxu0 0.0
        %1227 = vmatpush1.msra.mxu0 0.0
        %1228 = vmatprep.subr.mxu0 0.0
        %1229 = vmatpush1.msra.mxu0 0.0
        %1230 = vmatprep.subr.mxu0 0.0
        %1231 = vmatpush1.msra.mxu0 0.0
        %1232 = vmatprep.subr.mxu0 0.0
        %1233 = vmatpush1.msra.mxu0 0.0
        %1234 = vmatprep.subr.mxu0 0.0
        %1235 = vmatpush1.msra.mxu0 0.0
        %1236 = vmatprep.subr.mxu0 0.0
        %1237 = vmatpush1.msra.mxu0 0.0
        %1238 = vmatprep.subr.mxu0 0.0
        %1239 = vmatpush1.msra.mxu0 0.0
        %1240 = vmatprep.subr.mxu0 0.0
        %1241 = vmatpush1.msra.mxu0 0.0
        %1242 = vmatprep.subr.mxu0 0.0
        %1243 = vmatpush1.msra.mxu0 0.0
        %1244 = vmatprep.subr.mxu0 0.0
        %1245 = vmatpush1.msra.mxu0 0.0
        %1246 = vmatprep.subr.mxu0 0.0
        %1247 = vmatpush1.msra.mxu0 0.0
        %1248 = vmatprep.subr.mxu0 0.0
        %1249 = vmatpush1.msra.mxu0 0.0
        %1250 = vmatprep.subr.mxu0 0.0
        %1251 = vmatpush1.msra.mxu0 0.0
        %1252 = vmatprep.subr.mxu0 0.0
        %1253 = vmatpush1.msra.mxu0 0.0
        %1254 = vmatprep.subr.mxu0 0.0
        %1255 = vmatpush1.msra.mxu0 0.0
        %1256 = vmatprep.subr.mxu0 0.0
        %1257 = vmatpush1.msra.mxu0 0.0
        %1258 = vmatprep.subr.mxu0 0.0
        %1259 = vmatpush1.msra.mxu0 0.0
        %1260 = vmatprep.mubr.f32.mxu0 0.0
        %1261 = vmatmul.mubr.f32.gmra.mrb[0].mxu0 %v1194
        %v1262 = vpop.f32.mrb[0].mxu0
        %v1263 = vadd.f32 %v1176, %v1262
        %v1264 = vpop.f32.mrb[0].mxu0
        %v1265 = vadd.f32 %v1180, %v1264
        %1266 = vdwg.mxu0
        %1267 = vmatprep.subr.mxu0 %v1142
        %1268 = vmatpush1.msra.mxu0 %v1141
        %1269 = vmatprep.subr.mxu0 %v1146
        %1270 = vmatpush1.msra.mxu0 %v1145
        %1271 = vmatprep.subr.mxu0 %v1150
        %1272 = vmatpush1.msra.mxu0 %v1149
        %1273 = vmatprep.subr.mxu0 %v1154
        %1274 = vmatpush1.msra.mxu0 %v1153
        %1275 = vmatprep.subr.mxu0 %v1158
        %1276 = vmatpush1.msra.mxu0 %v1157
        %1277 = vmatprep.subr.mxu0 %v1162
        %1278 = vmatpush1.msra.mxu0 %v1161
        %1279 = vmatprep.subr.mxu0 %v1166
        %1280 = vmatpush1.msra.mxu0 %v1165
        %1281 = vmatprep.subr.mxu0 %v1170
        %1282 = vmatpush1.msra.mxu0 %v1169
        %1283 = vmatprep.subr.mxu0 0.0
        %1284 = vmatpush1.msra.mxu0 0.0
        %1285 = vmatprep.subr.mxu0 0.0
        %1286 = vmatpush1.msra.mxu0 0.0
        %1287 = vmatprep.subr.mxu0 0.0
        %1288 = vmatpush1.msra.mxu0 0.0
        %1289 = vmatprep.subr.mxu0 0.0
        %1290 = vmatpush1.msra.mxu0 0.0
        %1291 = vmatprep.subr.mxu0 0.0
        %1292 = vmatpush1.msra.mxu0 0.0
        %1293 = vmatprep.subr.mxu0 0.0
        %1294 = vmatpush1.msra.mxu0 0.0
        %1295 = vmatprep.subr.mxu0 0.0
        %1296 = vmatpush1.msra.mxu0 0.0
        %1297 = vmatprep.subr.mxu0 0.0
        %1298 = vmatpush1.msra.mxu0 0.0
        %1299 = vmatprep.subr.mxu0 0.0
        %1300 = vmatpush1.msra.mxu0 0.0
        %1301 = vmatprep.subr.mxu0 0.0
        %1302 = vmatpush1.msra.mxu0 0.0
        %1303 = vmatprep.subr.mxu0 0.0
        %1304 = vmatpush1.msra.mxu0 0.0
        %1305 = vmatprep.subr.mxu0 0.0
        %1306 = vmatpush1.msra.mxu0 0.0
        %1307 = vmatprep.subr.mxu0 0.0
        %1308 = vmatpush1.msra.mxu0 0.0
        %1309 = vmatprep.subr.mxu0 0.0
        %1310 = vmatpush1.msra.mxu0 0.0
        %1311 = vmatprep.subr.mxu0 0.0
        %1312 = vmatpush1.msra.mxu0 0.0
        %1313 = vmatprep.subr.mxu0 0.0
        %1314 = vmatpush1.msra.mxu0 0.0
        %1315 = vmatprep.subr.mxu0 0.0
        %1316 = vmatpush1.msra.mxu0 0.0
        %1317 = vmatprep.subr.mxu0 0.0
        %1318 = vmatpush1.msra.mxu0 0.0
        %1319 = vmatprep.subr.mxu0 0.0
        %1320 = vmatpush1.msra.mxu0 0.0
        %1321 = vmatprep.subr.mxu0 0.0
        %1322 = vmatpush1.msra.mxu0 0.0
        %1323 = vmatprep.subr.mxu0 0.0
        %1324 = vmatpush1.msra.mxu0 0.0
        %1325 = vmatprep.subr.mxu0 0.0
        %1326 = vmatpush1.msra.mxu0 0.0
        %1327 = vmatprep.subr.mxu0 0.0
        %1328 = vmatpush1.msra.mxu0 0.0
        %1329 = vmatprep.subr.mxu0 0.0
        %1330 = vmatpush1.msra.mxu0 0.0
        %1331 = vmatprep.mubr.f32.mxu0 0.0
        %1332 = vmatmul.mubr.f32.gmra.mrb[0].mxu0 %v1194
        %v1333 = vpop.f32.mrb[0].mxu0
        %v1334 = vadd.f32 %v1184, %v1333
        %v1335 = vpop.f32.mrb[0].mxu0
        %v1336 = vadd.f32 %v1188, %v1335
        %1337 = vdwg.mxu0
        %v1338 = vmax.f32 %v1263, 0.0
        %v1339 = vmax.f32 %v1265, 0.0
        %v1340 = vmax.f32 %v1334, 0.0
        %v1341 = vmax.f32 %v1336, 0.0
        %v1342 = vld [vmem:[#allocation10] sm:$0xff]
        %v1343 = vld [vmem:[#allocation10 + $0x8] sm:$0xff]
        %v1344 = vld [vmem:[#allocation10 + $0x10] sm:$0xff]
        %v1345 = vld [vmem:[#allocation10 + $0x18] sm:$0xff]
        %v1346 = vld [vmem:[#allocation10 + $0x20] sm:$0xff]
        %v1347 = vld [vmem:[#allocation10 + $0x28] sm:$0xff]
        %v1348 = vld [vmem:[#allocation10 + $0x30] sm:$0xff]
        %v1349 = vld [vmem:[#allocation10 + $0x38] sm:$0xff]
        %v1350 = vld [vmem:[#allocation10 + $0x40] sm:$0xff]
        %v1351 = vld [vmem:[#allocation10 + $0x48] sm:$0xff]
        %v1352 = vld [vmem:[#allocation10 + $0x50] sm:$0xff]
        %v1353 = vld [vmem:[#allocation10 + $0x58] sm:$0xff]
        %v1354 = vld [vmem:[#allocation10 + $0x60] sm:$0xff]
        %v1355 = vld [vmem:[#allocation10 + $0x68] sm:$0xff]
        %v1356 = vld [vmem:[#allocation10 + $0x70] sm:$0xff]
        %v1357 = vld [vmem:[#allocation10 + $0x78] sm:$0xff]
        %v1358 = vld [vmem:[#allocation10 + $0x80] sm:$0xff]
        %v1359 = vld [vmem:[#allocation10 + $0x88] sm:$0xff]
        %v1360 = vld [vmem:[#allocation10 + $0x90] sm:$0xff]
        %v1361 = vld [vmem:[#allocation10 + $0x98] sm:$0xff]
        %v1362 = vld [vmem:[#allocation10 + $0xa0] sm:$0xff]
        %v1363 = vld [vmem:[#allocation10 + $0xa8] sm:$0xff]
        %v1364 = vld [vmem:[#allocation10 + $0xb0] sm:$0xff]
        %v1365 = vld [vmem:[#allocation10 + $0xb8] sm:$0xff]
        %v1366 = vld [vmem:[#allocation10 + $0xc0] sm:$0xff]
        %v1367 = vld [vmem:[#allocation10 + $0xc8] sm:$0xff]
        %v1368 = vld [vmem:[#allocation10 + $0xd0] sm:$0xff]
        %v1369 = vld [vmem:[#allocation10 + $0xd8] sm:$0xff]
        %v1370 = vld [vmem:[#allocation10 + $0xe0] sm:$0xff]
        %v1371 = vld [vmem:[#allocation10 + $0xe8] sm:$0xff]
        %v1372 = vld [vmem:[#allocation10 + $0xf0] sm:$0xff]
        %v1373 = vld [vmem:[#allocation10 + $0xf8] sm:$0xff]
        %v1374 = vld [vmem:[#allocation10 + $0x100] sm:$0xff]
        %v1375 = vld [vmem:[#allocation10 + $0x108] sm:$0xff]
        %v1376 = vld [vmem:[#allocation10 + $0x110] sm:$0xff]
        %v1377 = vld [vmem:[#allocation10 + $0x118] sm:$0xff]
        %v1378 = vld [vmem:[#allocation10 + $0x120] sm:$0xff]
        %v1379 = vld [vmem:[#allocation10 + $0x128] sm:$0xff]
        %v1380 = vld [vmem:[#allocation10 + $0x130] sm:$0xff]
        %v1381 = vld [vmem:[#allocation10 + $0x138] sm:$0xff]
        %v1382 = vld [vmem:[#allocation10 + $0x140] sm:$0xff]
        %v1383 = vld [vmem:[#allocation10 + $0x148] sm:$0xff]
        %v1384 = vld [vmem:[#allocation10 + $0x150] sm:$0xff]
        %v1385 = vld [vmem:[#allocation10 + $0x158] sm:$0xff]
        %v1386 = vld [vmem:[#allocation10 + $0x160] sm:$0xff]
        %v1387 = vld [vmem:[#allocation10 + $0x168] sm:$0xff]
        %v1388 = vld [vmem:[#allocation10 + $0x170] sm:$0xff]
        %v1389 = vld [vmem:[#allocation10 + $0x178] sm:$0xff]
        %v1390 = vld [vmem:[#allocation10 + $0x180] sm:$0xff]
        %v1391 = vld [vmem:[#allocation10 + $0x188] sm:$0xff]
        %v1392 = vld [vmem:[#allocation10 + $0x190] sm:$0xff]
        %v1393 = vld [vmem:[#allocation10 + $0x198] sm:$0xff]
        %v1394 = vld [vmem:[#allocation10 + $0x1a0] sm:$0xff]
        %v1395 = vld [vmem:[#allocation10 + $0x1a8] sm:$0xff]
        %v1396 = vld [vmem:[#allocation10 + $0x1b0] sm:$0xff]
        %v1397 = vld [vmem:[#allocation10 + $0x1b8] sm:$0xff]
        %v1398 = vld [vmem:[#allocation10 + $0x1c0] sm:$0xff]
        %v1399 = vld [vmem:[#allocation10 + $0x1c8] sm:$0xff]
        %v1400 = vld [vmem:[#allocation10 + $0x1d0] sm:$0xff]
        %v1401 = vld [vmem:[#allocation10 + $0x1d8] sm:$0xff]
        %v1402 = vld [vmem:[#allocation10 + $0x1e0] sm:$0xff]
        %v1403 = vld [vmem:[#allocation10 + $0x1e8] sm:$0xff]
        %v1404 = vld [vmem:[#allocation10 + $0x1f0] sm:$0xff]
        %v1405 = vld [vmem:[#allocation10 + $0x1f8] sm:$0xff]
        %v1406 = vld [vmem:[#allocation10 + $0x200] sm:$0xff]
        %v1407 = vld [vmem:[#allocation10 + $0x208] sm:$0xff]
        %v1408 = vld [vmem:[#allocation10 + $0x210] sm:$0xff]
        %v1409 = vld [vmem:[#allocation10 + $0x218] sm:$0xff]
        %v1410 = vld [vmem:[#allocation10 + $0x220] sm:$0xff]
        %v1411 = vld [vmem:[#allocation10 + $0x228] sm:$0xff]
        %v1412 = vld [vmem:[#allocation10 + $0x230] sm:$0xff]
        %v1413 = vld [vmem:[#allocation10 + $0x238] sm:$0xff]
        %v1414 = vld [vmem:[#allocation10 + $0x240] sm:$0xff]
        %v1415 = vld [vmem:[#allocation10 + $0x248] sm:$0xff]
        %v1416 = vld [vmem:[#allocation10 + $0x250] sm:$0xff]
        %v1417 = vld [vmem:[#allocation10 + $0x258] sm:$0xff]
        %v1418 = vld [vmem:[#allocation10 + $0x260] sm:$0xff]
        %v1419 = vld [vmem:[#allocation10 + $0x268] sm:$0xff]
        %v1420 = vld [vmem:[#allocation10 + $0x270] sm:$0xff]
        %v1421 = vld [vmem:[#allocation10 + $0x278] sm:$0xff]
        %v1422 = vld [vmem:[#allocation10 + $0x280] sm:$0xff]
        %v1423 = vld [vmem:[#allocation10 + $0x288] sm:$0xff]
        %v1424 = vld [vmem:[#allocation10 + $0x290] sm:$0xff]
        %v1425 = vld [vmem:[#allocation10 + $0x298] sm:$0xff]
        %v1426 = vld [vmem:[#allocation10 + $0x2a0] sm:$0xff]
        %v1427 = vld [vmem:[#allocation10 + $0x2a8] sm:$0xff]
        %v1428 = vld [vmem:[#allocation10 + $0x2b0] sm:$0xff]
        %v1429 = vld [vmem:[#allocation10 + $0x2b8] sm:$0xff]
        %v1430 = vld [vmem:[#allocation10 + $0x2c0] sm:$0xff]
        %v1431 = vld [vmem:[#allocation10 + $0x2c8] sm:$0xff]
        %v1432 = vld [vmem:[#allocation10 + $0x2d0] sm:$0xff]
        %v1433 = vld [vmem:[#allocation10 + $0x2d8] sm:$0xff]
        %v1434 = vld [vmem:[#allocation10 + $0x2e0] sm:$0xff]
        %v1435 = vld [vmem:[#allocation10 + $0x2e8] sm:$0xff]
        %v1436 = vld [vmem:[#allocation10 + $0x2f0] sm:$0xff]
        %v1437 = vld [vmem:[#allocation10 + $0x2f8] sm:$0xff]
        %v1438 = vld [vmem:[#allocation10 + $0x300] sm:$0xff]
        %v1439 = vld [vmem:[#allocation10 + $0x308] sm:$0xff]
        %v1440 = vld [vmem:[#allocation10 + $0x310] sm:$0xff]
        %v1441 = vld [vmem:[#allocation10 + $0x318] sm:$0xff]
        %v1442 = vld [vmem:[#allocation10 + $0x320] sm:$0xff]
        %v1443 = vld [vmem:[#allocation10 + $0x328] sm:$0xff]
        %v1444 = vld [vmem:[#allocation10 + $0x330] sm:$0xff]
        %v1445 = vld [vmem:[#allocation10 + $0x338] sm:$0xff]
        %v1446 = vld [vmem:[#allocation10 + $0x340] sm:$0xff]
        %v1447 = vld [vmem:[#allocation10 + $0x348] sm:$0xff]
        %v1448 = vld [vmem:[#allocation10 + $0x350] sm:$0xff]
        %v1449 = vld [vmem:[#allocation10 + $0x358] sm:$0xff]
        %v1450 = vld [vmem:[#allocation10 + $0x360] sm:$0xff]
        %v1451 = vld [vmem:[#allocation10 + $0x368] sm:$0xff]
        %v1452 = vld [vmem:[#allocation10 + $0x370] sm:$0xff]
        %v1453 = vld [vmem:[#allocation10 + $0x378] sm:$0xff]
        %v1454 = vld [vmem:[#allocation10 + $0x380] sm:$0xff]
        %v1455 = vld [vmem:[#allocation10 + $0x388] sm:$0xff]
        %v1456 = vld [vmem:[#allocation10 + $0x390] sm:$0xff]
        %v1457 = vld [vmem:[#allocation10 + $0x398] sm:$0xff]
        %v1458 = vld [vmem:[#allocation10 + $0x3a0] sm:$0xff]
        %v1459 = vld [vmem:[#allocation10 + $0x3a8] sm:$0xff]
        %v1460 = vld [vmem:[#allocation10 + $0x3b0] sm:$0xff]
        %v1461 = vld [vmem:[#allocation10 + $0x3b8] sm:$0xff]
        %v1462 = vld [vmem:[#allocation10 + $0x3c0] sm:$0xff]
        %v1463 = vld [vmem:[#allocation10 + $0x3c8] sm:$0xff]
        %v1464 = vld [vmem:[#allocation10 + $0x3d0] sm:$0xff]
        %v1465 = vld [vmem:[#allocation10 + $0x3d8] sm:$0xff]
        %v1466 = vld [vmem:[#allocation10 + $0x3e0] sm:$0xff]
        %v1467 = vld [vmem:[#allocation10 + $0x3e8] sm:$0xff]
        %v1468 = vld [vmem:[#allocation10 + $0x3f0] sm:$0xff]
        %v1469 = vld [vmem:[#allocation10 + $0x3f8] sm:$0xff]
        %v1470 = vld [vmem:[#allocation10 + $0x400] sm:$0xff]
        %v1471 = vld [vmem:[#allocation10 + $0x408] sm:$0xff]
        %v1472 = vld [vmem:[#allocation10 + $0x410] sm:$0xff]
        %v1473 = vld [vmem:[#allocation10 + $0x418] sm:$0xff]
        %v1474 = vld [vmem:[#allocation10 + $0x420] sm:$0xff]
        %v1475 = vld [vmem:[#allocation10 + $0x428] sm:$0xff]
        %v1476 = vld [vmem:[#allocation10 + $0x430] sm:$0xff]
        %v1477 = vld [vmem:[#allocation10 + $0x438] sm:$0xff]
        %v1478 = vld [vmem:[#allocation10 + $0x440] sm:$0xff]
        %v1479 = vld [vmem:[#allocation10 + $0x448] sm:$0xff]
        %v1480 = vld [vmem:[#allocation10 + $0x450] sm:$0xff]
        %v1481 = vld [vmem:[#allocation10 + $0x458] sm:$0xff]
        %v1482 = vld [vmem:[#allocation10 + $0x460] sm:$0xff]
        %v1483 = vld [vmem:[#allocation10 + $0x468] sm:$0xff]
        %v1484 = vld [vmem:[#allocation10 + $0x470] sm:$0xff]
        %v1485 = vld [vmem:[#allocation10 + $0x478] sm:$0xff]
        %v1486 = vld [vmem:[#allocation10 + $0x480] sm:$0xff]
        %v1487 = vld [vmem:[#allocation10 + $0x488] sm:$0xff]
        %v1488 = vld [vmem:[#allocation10 + $0x490] sm:$0xff]
        %v1489 = vld [vmem:[#allocation10 + $0x498] sm:$0xff]
        %v1490 = vld [vmem:[#allocation10 + $0x4a0] sm:$0xff]
        %v1491 = vld [vmem:[#allocation10 + $0x4a8] sm:$0xff]
        %v1492 = vld [vmem:[#allocation10 + $0x4b0] sm:$0xff]
        %v1493 = vld [vmem:[#allocation10 + $0x4b8] sm:$0xff]
        %v1494 = vld [vmem:[#allocation10 + $0x4c0] sm:$0xff]
        %v1495 = vld [vmem:[#allocation10 + $0x4c8] sm:$0xff]
        %v1496 = vld [vmem:[#allocation10 + $0x4d0] sm:$0xff]
        %v1497 = vld [vmem:[#allocation10 + $0x4d8] sm:$0xff]
        %v1498 = vld [vmem:[#allocation10 + $0x4e0] sm:$0xff]
        %v1499 = vld [vmem:[#allocation10 + $0x4e8] sm:$0xff]
        %v1500 = vld [vmem:[#allocation10 + $0x4f0] sm:$0xff]
        %v1501 = vld [vmem:[#allocation10 + $0x4f8] sm:$0xff]
        %v1502 = vld [vmem:[#allocation10 + $0x500] sm:$0xff]
        %v1503 = vld [vmem:[#allocation10 + $0x508] sm:$0xff]
        %v1504 = vld [vmem:[#allocation10 + $0x510] sm:$0xff]
        %v1505 = vld [vmem:[#allocation10 + $0x518] sm:$0xff]
        %v1506 = vld [vmem:[#allocation10 + $0x520] sm:$0xff]
        %v1507 = vld [vmem:[#allocation10 + $0x528] sm:$0xff]
        %v1508 = vld [vmem:[#allocation10 + $0x530] sm:$0xff]
        %v1509 = vld [vmem:[#allocation10 + $0x538] sm:$0xff]
        %v1510 = vld [vmem:[#allocation10 + $0x540] sm:$0xff]
        %v1511 = vld [vmem:[#allocation10 + $0x548] sm:$0xff]
        %v1512 = vld [vmem:[#allocation10 + $0x550] sm:$0xff]
        %v1513 = vld [vmem:[#allocation10 + $0x558] sm:$0xff]
        %v1514 = vld [vmem:[#allocation10 + $0x560] sm:$0xff]
        %v1515 = vld [vmem:[#allocation10 + $0x568] sm:$0xff]
        %v1516 = vld [vmem:[#allocation10 + $0x570] sm:$0xff]
        %v1517 = vld [vmem:[#allocation10 + $0x578] sm:$0xff]
        %v1518 = vld [vmem:[#allocation10 + $0x580] sm:$0xff]
        %v1519 = vld [vmem:[#allocation10 + $0x588] sm:$0xff]
        %v1520 = vld [vmem:[#allocation10 + $0x590] sm:$0xff]
        %v1521 = vld [vmem:[#allocation10 + $0x598] sm:$0xff]
        %v1522 = vld [vmem:[#allocation10 + $0x5a0] sm:$0xff]
        %v1523 = vld [vmem:[#allocation10 + $0x5a8] sm:$0xff]
        %v1524 = vld [vmem:[#allocation10 + $0x5b0] sm:$0xff]
        %v1525 = vld [vmem:[#allocation10 + $0x5b8] sm:$0xff]
        %v1526 = vld [vmem:[#allocation10 + $0x5c0] sm:$0xff]
        %v1527 = vld [vmem:[#allocation10 + $0x5c8] sm:$0xff]
        %v1528 = vld [vmem:[#allocation10 + $0x5d0] sm:$0xff]
        %v1529 = vld [vmem:[#allocation10 + $0x5d8] sm:$0xff]
        %v1530 = vld [vmem:[#allocation10 + $0x5e0] sm:$0xff]
        %v1531 = vld [vmem:[#allocation10 + $0x5e8] sm:$0xff]
        %v1532 = vld [vmem:[#allocation10 + $0x5f0] sm:$0xff]
        %v1533 = vld [vmem:[#allocation10 + $0x5f8] sm:$0xff]
        %v1534 = vld [vmem:[#allocation10 + $0x600] sm:$0xff]
        %v1535 = vld [vmem:[#allocation10 + $0x608] sm:$0xff]
        %v1536 = vld [vmem:[#allocation10 + $0x610] sm:$0xff]
        %v1537 = vld [vmem:[#allocation10 + $0x618] sm:$0xff]
        %v1538 = vld [vmem:[#allocation10 + $0x620] sm:$0xff]
        %v1539 = vld [vmem:[#allocation10 + $0x628] sm:$0xff]
        %v1540 = vld [vmem:[#allocation10 + $0x630] sm:$0xff]
        %v1541 = vld [vmem:[#allocation10 + $0x638] sm:$0xff]
        %v1542 = vld [vmem:[#allocation10 + $0x640] sm:$0xff]
        %v1543 = vld [vmem:[#allocation10 + $0x648] sm:$0xff]
        %v1544 = vld [vmem:[#allocation10 + $0x650] sm:$0xff]
        %v1545 = vld [vmem:[#allocation10 + $0x658] sm:$0xff]
        %v1546 = vld [vmem:[#allocation10 + $0x660] sm:$0xff]
        %v1547 = vld [vmem:[#allocation10 + $0x668] sm:$0xff]
        %v1548 = vld [vmem:[#allocation10 + $0x670] sm:$0xff]
        %v1549 = vld [vmem:[#allocation10 + $0x678] sm:$0xff]
        %v1550 = vld [vmem:[#allocation10 + $0x680] sm:$0xff]
        %v1551 = vld [vmem:[#allocation10 + $0x688] sm:$0xff]
        %v1552 = vld [vmem:[#allocation10 + $0x690] sm:$0xff]
        %v1553 = vld [vmem:[#allocation10 + $0x698] sm:$0xff]
        %v1554 = vld [vmem:[#allocation10 + $0x6a0] sm:$0xff]
        %v1555 = vld [vmem:[#allocation10 + $0x6a8] sm:$0xff]
        %v1556 = vld [vmem:[#allocation10 + $0x6b0] sm:$0xff]
        %v1557 = vld [vmem:[#allocation10 + $0x6b8] sm:$0xff]
        %v1558 = vld [vmem:[#allocation10 + $0x6c0] sm:$0xff]
        %v1559 = vld [vmem:[#allocation10 + $0x6c8] sm:$0xff]
        %v1560 = vld [vmem:[#allocation10 + $0x6d0] sm:$0xff]
        %v1561 = vld [vmem:[#allocation10 + $0x6d8] sm:$0xff]
        %v1562 = vld [vmem:[#allocation10 + $0x6e0] sm:$0xff]
        %v1563 = vld [vmem:[#allocation10 + $0x6e8] sm:$0xff]
        %v1564 = vld [vmem:[#allocation10 + $0x6f0] sm:$0xff]
        %v1565 = vld [vmem:[#allocation10 + $0x6f8] sm:$0xff]
        %v1566 = vld [vmem:[#allocation10 + $0x700] sm:$0xff]
        %v1567 = vld [vmem:[#allocation10 + $0x708] sm:$0xff]
        %v1568 = vld [vmem:[#allocation10 + $0x710] sm:$0xff]
        %v1569 = vld [vmem:[#allocation10 + $0x718] sm:$0xff]
        %v1570 = vld [vmem:[#allocation10 + $0x720] sm:$0xff]
        %v1571 = vld [vmem:[#allocation10 + $0x728] sm:$0xff]
        %v1572 = vld [vmem:[#allocation10 + $0x730] sm:$0xff]
        %v1573 = vld [vmem:[#allocation10 + $0x738] sm:$0xff]
        %v1574 = vld [vmem:[#allocation10 + $0x740] sm:$0xff]
        %v1575 = vld [vmem:[#allocation10 + $0x748] sm:$0xff]
        %v1576 = vld [vmem:[#allocation10 + $0x750] sm:$0xff]
        %v1577 = vld [vmem:[#allocation10 + $0x758] sm:$0xff]
        %v1578 = vld [vmem:[#allocation10 + $0x760] sm:$0xff]
        %v1579 = vld [vmem:[#allocation10 + $0x768] sm:$0xff]
        %v1580 = vld [vmem:[#allocation10 + $0x770] sm:$0xff]
        %v1581 = vld [vmem:[#allocation10 + $0x778] sm:$0xff]
        %v1582 = vld [vmem:[#allocation10 + $0x780] sm:$0xff]
        %v1583 = vld [vmem:[#allocation10 + $0x788] sm:$0xff]
        %v1584 = vld [vmem:[#allocation10 + $0x790] sm:$0xff]
        %v1585 = vld [vmem:[#allocation10 + $0x798] sm:$0xff]
        %v1586 = vld [vmem:[#allocation10 + $0x7a0] sm:$0xff]
        %v1587 = vld [vmem:[#allocation10 + $0x7a8] sm:$0xff]
        %v1588 = vld [vmem:[#allocation10 + $0x7b0] sm:$0xff]
        %v1589 = vld [vmem:[#allocation10 + $0x7b8] sm:$0xff]
        %v1590 = vld [vmem:[#allocation10 + $0x7c0] sm:$0xff]
        %v1591 = vld [vmem:[#allocation10 + $0x7c8] sm:$0xff]
        %v1592 = vld [vmem:[#allocation10 + $0x7d0] sm:$0xff]
        %v1593 = vld [vmem:[#allocation10 + $0x7d8] sm:$0xff]
        %v1594 = vld [vmem:[#allocation10 + $0x7e0] sm:$0xff]
        %v1595 = vld [vmem:[#allocation10 + $0x7e8] sm:$0xff]
        %v1596 = vld [vmem:[#allocation10 + $0x7f0] sm:$0xff]
        %v1597 = vld [vmem:[#allocation10 + $0x7f8] sm:$0xff]
        %v1598 = vld [vmem:[#allocation10 + $0x800] sm:$0xff]
        %v1599 = vld [vmem:[#allocation10 + $0x808] sm:$0xff]
        %v1600 = vld [vmem:[#allocation10 + $0x810] sm:$0xff]
        %v1601 = vld [vmem:[#allocation10 + $0x818] sm:$0xff]
        %v1602 = vld [vmem:[#allocation10 + $0x820] sm:$0xff]
        %v1603 = vld [vmem:[#allocation10 + $0x828] sm:$0xff]
        %v1604 = vld [vmem:[#allocation10 + $0x830] sm:$0xff]
        %v1605 = vld [vmem:[#allocation10 + $0x838] sm:$0xff]
        %v1606 = vld [vmem:[#allocation10 + $0x840] sm:$0xff]
        %v1607 = vld [vmem:[#allocation10 + $0x848] sm:$0xff]
        %v1608 = vld [vmem:[#allocation10 + $0x850] sm:$0xff]
        %v1609 = vld [vmem:[#allocation10 + $0x858] sm:$0xff]
        %v1610 = vld [vmem:[#allocation10 + $0x860] sm:$0xff]
        %v1611 = vld [vmem:[#allocation10 + $0x868] sm:$0xff]
        %v1612 = vld [vmem:[#allocation10 + $0x870] sm:$0xff]
        %v1613 = vld [vmem:[#allocation10 + $0x878] sm:$0xff]
        %v1614 = vld [vmem:[#allocation10 + $0x880] sm:$0xff]
        %v1615 = vld [vmem:[#allocation10 + $0x888] sm:$0xff]
        %v1616 = vld [vmem:[#allocation10 + $0x890] sm:$0xff]
        %v1617 = vld [vmem:[#allocation10 + $0x898] sm:$0xff]
        %v1618 = vld [vmem:[#allocation10 + $0x8a0] sm:$0xff]
        %v1619 = vld [vmem:[#allocation10 + $0x8a8] sm:$0xff]
        %v1620 = vld [vmem:[#allocation10 + $0x8b0] sm:$0xff]
        %v1621 = vld [vmem:[#allocation10 + $0x8b8] sm:$0xff]
        %v1622 = vld [vmem:[#allocation10 + $0x8c0] sm:$0xff]
        %v1623 = vld [vmem:[#allocation10 + $0x8c8] sm:$0xff]
        %v1624 = vld [vmem:[#allocation10 + $0x8d0] sm:$0xff]
        %v1625 = vld [vmem:[#allocation10 + $0x8d8] sm:$0xff]
        %v1626 = vld [vmem:[#allocation10 + $0x8e0] sm:$0xff]
        %v1627 = vld [vmem:[#allocation10 + $0x8e8] sm:$0xff]
        %v1628 = vld [vmem:[#allocation10 + $0x8f0] sm:$0xff]
        %v1629 = vld [vmem:[#allocation10 + $0x8f8] sm:$0xff]
        %v1630 = vld [vmem:[#allocation10 + $0x900] sm:$0xff]
        %v1631 = vld [vmem:[#allocation10 + $0x908] sm:$0xff]
        %v1632 = vld [vmem:[#allocation10 + $0x910] sm:$0xff]
        %v1633 = vld [vmem:[#allocation10 + $0x918] sm:$0xff]
        %v1634 = vld [vmem:[#allocation10 + $0x920] sm:$0xff]
        %v1635 = vld [vmem:[#allocation10 + $0x928] sm:$0xff]
        %v1636 = vld [vmem:[#allocation10 + $0x930] sm:$0xff]
        %v1637 = vld [vmem:[#allocation10 + $0x938] sm:$0xff]
        %v1638 = vld [vmem:[#allocation10 + $0x940] sm:$0xff]
        %v1639 = vld [vmem:[#allocation10 + $0x948] sm:$0xff]
        %v1640 = vld [vmem:[#allocation10 + $0x950] sm:$0xff]
        %v1641 = vld [vmem:[#allocation10 + $0x958] sm:$0xff]
        %v1642 = vld [vmem:[#allocation10 + $0x960] sm:$0xff]
        %v1643 = vld [vmem:[#allocation10 + $0x968] sm:$0xff]
        %v1644 = vld [vmem:[#allocation10 + $0x970] sm:$0xff]
        %v1645 = vld [vmem:[#allocation10 + $0x978] sm:$0xff]
        %v1646 = vld [vmem:[#allocation10 + $0x980] sm:$0xff]
        %v1647 = vld [vmem:[#allocation10 + $0x988] sm:$0xff]
        %v1648 = vld [vmem:[#allocation10 + $0x990] sm:$0xff]
        %v1649 = vld [vmem:[#allocation10 + $0x998] sm:$0xff]
        %v1650 = vld [vmem:[#allocation10 + $0x9a0] sm:$0xff]
        %v1651 = vld [vmem:[#allocation10 + $0x9a8] sm:$0xff]
        %v1652 = vld [vmem:[#allocation10 + $0x9b0] sm:$0xff]
        %v1653 = vld [vmem:[#allocation10 + $0x9b8] sm:$0xff]
        %v1654 = vld [vmem:[#allocation10 + $0x9c0] sm:$0xff]
        %v1655 = vld [vmem:[#allocation10 + $0x9c8] sm:$0xff]
        %v1656 = vld [vmem:[#allocation10 + $0x9d0] sm:$0xff]
        %v1657 = vld [vmem:[#allocation10 + $0x9d8] sm:$0xff]
        %v1658 = vld [vmem:[#allocation10 + $0x9e0] sm:$0xff]
        %v1659 = vld [vmem:[#allocation10 + $0x9e8] sm:$0xff]
        %v1660 = vld [vmem:[#allocation10 + $0x9f0] sm:$0xff]
        %v1661 = vld [vmem:[#allocation10 + $0x9f8] sm:$0xff]
        %v1662 = vld [vmem:[#allocation10 + $0xa00] sm:$0xff]
        %v1663 = vld [vmem:[#allocation10 + $0xa08] sm:$0xff]
        %v1664 = vld [vmem:[#allocation10 + $0xa10] sm:$0xff]
        %v1665 = vld [vmem:[#allocation10 + $0xa18] sm:$0xff]
        %v1666 = vld [vmem:[#allocation10 + $0xa20] sm:$0xff]
        %v1667 = vld [vmem:[#allocation10 + $0xa28] sm:$0xff]
        %v1668 = vld [vmem:[#allocation10 + $0xa30] sm:$0xff]
        %v1669 = vld [vmem:[#allocation10 + $0xa38] sm:$0xff]
        %v1670 = vld [vmem:[#allocation10 + $0xa40] sm:$0xff]
        %v1671 = vld [vmem:[#allocation10 + $0xa48] sm:$0xff]
        %v1672 = vld [vmem:[#allocation10 + $0xa50] sm:$0xff]
        %v1673 = vld [vmem:[#allocation10 + $0xa58] sm:$0xff]
        %v1674 = vld [vmem:[#allocation10 + $0xa60] sm:$0xff]
        %v1675 = vld [vmem:[#allocation10 + $0xa68] sm:$0xff]
        %v1676 = vld [vmem:[#allocation10 + $0xa70] sm:$0xff]
        %v1677 = vld [vmem:[#allocation10 + $0xa78] sm:$0xff]
        %v1678 = vld [vmem:[#allocation10 + $0xa80] sm:$0xff]
        %v1679 = vld [vmem:[#allocation10 + $0xa88] sm:$0xff]
        %v1680 = vld [vmem:[#allocation10 + $0xa90] sm:$0xff]
        %v1681 = vld [vmem:[#allocation10 + $0xa98] sm:$0xff]
        %v1682 = vld [vmem:[#allocation10 + $0xaa0] sm:$0xff]
        %v1683 = vld [vmem:[#allocation10 + $0xaa8] sm:$0xff]
        %v1684 = vld [vmem:[#allocation10 + $0xab0] sm:$0xff]
        %v1685 = vld [vmem:[#allocation10 + $0xab8] sm:$0xff]
        %v1686 = vld [vmem:[#allocation10 + $0xac0] sm:$0xff]
        %v1687 = vld [vmem:[#allocation10 + $0xac8] sm:$0xff]
        %v1688 = vld [vmem:[#allocation10 + $0xad0] sm:$0xff]
        %v1689 = vld [vmem:[#allocation10 + $0xad8] sm:$0xff]
        %v1690 = vld [vmem:[#allocation10 + $0xae0] sm:$0xff]
        %v1691 = vld [vmem:[#allocation10 + $0xae8] sm:$0xff]
        %v1692 = vld [vmem:[#allocation10 + $0xaf0] sm:$0xff]
        %v1693 = vld [vmem:[#allocation10 + $0xaf8] sm:$0xff]
        %v1694 = vld [vmem:[#allocation10 + $0xb00] sm:$0xff]
        %v1695 = vld [vmem:[#allocation10 + $0xb08] sm:$0xff]
        %v1696 = vld [vmem:[#allocation10 + $0xb10] sm:$0xff]
        %v1697 = vld [vmem:[#allocation10 + $0xb18] sm:$0xff]
        %v1698 = vld [vmem:[#allocation10 + $0xb20] sm:$0xff]
        %v1699 = vld [vmem:[#allocation10 + $0xb28] sm:$0xff]
        %v1700 = vld [vmem:[#allocation10 + $0xb30] sm:$0xff]
        %v1701 = vld [vmem:[#allocation10 + $0xb38] sm:$0xff]
        %v1702 = vld [vmem:[#allocation10 + $0xb40] sm:$0xff]
        %v1703 = vld [vmem:[#allocation10 + $0xb48] sm:$0xff]
        %v1704 = vld [vmem:[#allocation10 + $0xb50] sm:$0xff]
        %v1705 = vld [vmem:[#allocation10 + $0xb58] sm:$0xff]
        %v1706 = vld [vmem:[#allocation10 + $0xb60] sm:$0xff]
        %v1707 = vld [vmem:[#allocation10 + $0xb68] sm:$0xff]
        %v1708 = vld [vmem:[#allocation10 + $0xb70] sm:$0xff]
        %v1709 = vld [vmem:[#allocation10 + $0xb78] sm:$0xff]
        %v1710 = vld [vmem:[#allocation10 + $0xb80] sm:$0xff]
        %v1711 = vld [vmem:[#allocation10 + $0xb88] sm:$0xff]
        %v1712 = vld [vmem:[#allocation10 + $0xb90] sm:$0xff]
        %v1713 = vld [vmem:[#allocation10 + $0xb98] sm:$0xff]
        %v1714 = vld [vmem:[#allocation10 + $0xba0] sm:$0xff]
        %v1715 = vld [vmem:[#allocation10 + $0xba8] sm:$0xff]
        %v1716 = vld [vmem:[#allocation10 + $0xbb0] sm:$0xff]
        %v1717 = vld [vmem:[#allocation10 + $0xbb8] sm:$0xff]
        %v1718 = vld [vmem:[#allocation10 + $0xbc0] sm:$0xff]
        %v1719 = vld [vmem:[#allocation10 + $0xbc8] sm:$0xff]
        %v1720 = vld [vmem:[#allocation10 + $0xbd0] sm:$0xff]
        %v1721 = vld [vmem:[#allocation10 + $0xbd8] sm:$0xff]
        %v1722 = vld [vmem:[#allocation10 + $0xbe0] sm:$0xff]
        %v1723 = vld [vmem:[#allocation10 + $0xbe8] sm:$0xff]
        %v1724 = vld [vmem:[#allocation10 + $0xbf0] sm:$0xff]
        %v1725 = vld [vmem:[#allocation10 + $0xbf8] sm:$0xff]
        %v1726 = vld [vmem:[#allocation11] sm:$0x3f]
        %v1728 = vlaneseq
        %v1729 = vshrl.u32 %v1728, 7
        %v1730 = vsub.s32 0, %v1729
        %v1731 = vrot.slane %v1726, %v1730
        %v1732 = vlaneseq
        %v1733 = vshrl.u32 %v1732, 7
        %v1734 = vsub.s32 1, %v1733
        %v1735 = vrot.slane %v1726, %v1734
        %v1736 = vlaneseq
        %v1737 = vshrl.u32 %v1736, 7
        %v1738 = vsub.s32 2, %v1737
        %v1739 = vrot.slane %v1726, %v1738
        %v1740 = vlaneseq
        %v1741 = vshrl.u32 %v1740, 7
        %v1742 = vsub.s32 3, %v1741
        %v1743 = vrot.slane %v1726, %v1742
        %v1744 = vlaneseq
        %v1745 = vshrl.u32 %v1744, 7
        %v1746 = vsub.s32 4, %v1745
        %v1747 = vrot.slane %v1726, %v1746
        %v1748 = vlaneseq
        %v1749 = vshrl.u32 %v1748, 7
        %v1750 = vsub.s32 5, %v1749
        %v1751 = vrot.slane %v1726, %v1750
        %1758 = vmatprep.subr.mxu0 %v1343
        %1759 = vmatpush1.msra.mxu0 %v1342
        %1760 = vmatprep.subr.mxu0 %v1349
        %1761 = vmatpush1.msra.mxu0 %v1348
        %1762 = vmatprep.subr.mxu0 %v1355
        %1763 = vmatpush1.msra.mxu0 %v1354
        %1764 = vmatprep.subr.mxu0 %v1361
        %1765 = vmatpush1.msra.mxu0 %v1360
        %1766 = vmatprep.subr.mxu0 %v1367
        %1767 = vmatpush1.msra.mxu0 %v1366
        %1768 = vmatprep.subr.mxu0 %v1373
        %1769 = vmatpush1.msra.mxu0 %v1372
        %1770 = vmatprep.subr.mxu0 %v1379
        %1771 = vmatpush1.msra.mxu0 %v1378
        %1772 = vmatprep.subr.mxu0 %v1385
        %1773 = vmatpush1.msra.mxu0 %v1384
        %1774 = vmatprep.subr.mxu0 %v1391
        %1775 = vmatpush1.msra.mxu0 %v1390
        %1776 = vmatprep.subr.mxu0 %v1397
        %1777 = vmatpush1.msra.mxu0 %v1396
        %1778 = vmatprep.subr.mxu0 %v1403
        %1779 = vmatpush1.msra.mxu0 %v1402
        %1780 = vmatprep.subr.mxu0 %v1409
        %1781 = vmatpush1.msra.mxu0 %v1408
        %1782 = vmatprep.subr.mxu0 %v1415
        %1783 = vmatpush1.msra.mxu0 %v1414
        %1784 = vmatprep.subr.mxu0 %v1421
        %1785 = vmatpush1.msra.mxu0 %v1420
        %1786 = vmatprep.subr.mxu0 %v1427
        %1787 = vmatpush1.msra.mxu0 %v1426
        %1788 = vmatprep.subr.mxu0 %v1433
        %1789 = vmatpush1.msra.mxu0 %v1432
        %1790 = vmatprep.subr.mxu0 %v1439
        %1791 = vmatpush1.msra.mxu0 %v1438
        %1792 = vmatprep.subr.mxu0 %v1445
        %1793 = vmatpush1.msra.mxu0 %v1444
        %1794 = vmatprep.subr.mxu0 %v1451
        %1795 = vmatpush1.msra.mxu0 %v1450
        %1796 = vmatprep.subr.mxu0 %v1457
        %1797 = vmatpush1.msra.mxu0 %v1456
        %1798 = vmatprep.subr.mxu0 %v1463
        %1799 = vmatpush1.msra.mxu0 %v1462
        %1800 = vmatprep.subr.mxu0 %v1469
        %1801 = vmatpush1.msra.mxu0 %v1468
        %1802 = vmatprep.subr.mxu0 %v1475
        %1803 = vmatpush1.msra.mxu0 %v1474
        %1804 = vmatprep.subr.mxu0 %v1481
        %1805 = vmatpush1.msra.mxu0 %v1480
        %1806 = vmatprep.subr.mxu0 %v1487
        %1807 = vmatpush1.msra.mxu0 %v1486
        %1808 = vmatprep.subr.mxu0 %v1493
        %1809 = vmatpush1.msra.mxu0 %v1492
        %1810 = vmatprep.subr.mxu0 %v1499
        %1811 = vmatpush1.msra.mxu0 %v1498
        %1812 = vmatprep.subr.mxu0 %v1505
        %1813 = vmatpush1.msra.mxu0 %v1504
        %1814 = vmatprep.subr.mxu0 %v1511
        %1815 = vmatpush1.msra.mxu0 %v1510
        %1816 = vmatprep.subr.mxu0 %v1517
        %1817 = vmatpush1.msra.mxu0 %v1516
        %1818 = vmatprep.subr.mxu0 %v1523
        %1819 = vmatpush1.msra.mxu0 %v1522
        %1820 = vmatprep.subr.mxu0 %v1529
        %1821 = vmatpush1.msra.mxu0 %v1528
        %1822 = vmatprep.mubr.f32.mxu0 %v1339
        %1823 = vmatmul.mubr.f32.gmra.mrb[0].mxu0 %v1338
        %v1824 = vpop.f32.mrb[0].mxu0
        %v1825 = vadd.f32 %v1731, %v1824
        %v1826 = vpop.f32.mrb[0].mxu0
        %v1827 = vadd.f32 %v1735, %v1826
        %1828 = vdwg.mxu0
        %1829 = vmatprep.subr.mxu0 %v1535
        %1830 = vmatpush1.msra.mxu0 %v1534
        %1831 = vmatprep.subr.mxu0 %v1541
        %1832 = vmatpush1.msra.mxu0 %v1540
        %1833 = vmatprep.subr.mxu0 %v1547
        %1834 = vmatpush1.msra.mxu0 %v1546
        %1835 = vmatprep.subr.mxu0 %v1553
        %1836 = vmatpush1.msra.mxu0 %v1552
        %1837 = vmatprep.subr.mxu0 %v1559
        %1838 = vmatpush1.msra.mxu0 %v1558
        %1839 = vmatprep.subr.mxu0 %v1565
        %1840 = vmatpush1.msra.mxu0 %v1564
        %1841 = vmatprep.subr.mxu0 %v1571
        %1842 = vmatpush1.msra.mxu0 %v1570
        %1843 = vmatprep.subr.mxu0 %v1577
        %1844 = vmatpush1.msra.mxu0 %v1576
        %1845 = vmatprep.subr.mxu0 %v1583
        %1846 = vmatpush1.msra.mxu0 %v1582
        %1847 = vmatprep.subr.mxu0 %v1589
        %1848 = vmatpush1.msra.mxu0 %v1588
        %1849 = vmatprep.subr.mxu0 %v1595
        %1850 = vmatpush1.msra.mxu0 %v1594
        %1851 = vmatprep.subr.mxu0 %v1601
        %1852 = vmatpush1.msra.mxu0 %v1600
        %1853 = vmatprep.subr.mxu0 %v1607
        %1854 = vmatpush1.msra.mxu0 %v1606
        %1855 = vmatprep.subr.mxu0 %v1613
        %1856 = vmatpush1.msra.mxu0 %v1612
        %1857 = vmatprep.subr.mxu0 %v1619
        %1858 = vmatpush1.msra.mxu0 %v1618
        %1859 = vmatprep.subr.mxu0 %v1625
        %1860 = vmatpush1.msra.mxu0 %v1624
        %1861 = vmatprep.subr.mxu0 %v1631
        %1862 = vmatpush1.msra.mxu0 %v1630
        %1863 = vmatprep.subr.mxu0 %v1637
        %1864 = vmatpush1.msra.mxu0 %v1636
        %1865 = vmatprep.subr.mxu0 %v1643
        %1866 = vmatpush1.msra.mxu0 %v1642
        %1867 = vmatprep.subr.mxu0 %v1649
        %1868 = vmatpush1.msra.mxu0 %v1648
        %1869 = vmatprep.subr.mxu0 %v1655
        %1870 = vmatpush1.msra.mxu0 %v1654
        %1871 = vmatprep.subr.mxu0 %v1661
        %1872 = vmatpush1.msra.mxu0 %v1660
        %1873 = vmatprep.subr.mxu0 %v1667
        %1874 = vmatpush1.msra.mxu0 %v1666
        %1875 = vmatprep.subr.mxu0 %v1673
        %1876 = vmatpush1.msra.mxu0 %v1672
        %1877 = vmatprep.subr.mxu0 %v1679
        %1878 = vmatpush1.msra.mxu0 %v1678
        %1879 = vmatprep.subr.mxu0 %v1685
        %1880 = vmatpush1.msra.mxu0 %v1684
        %1881 = vmatprep.subr.mxu0 %v1691
        %1882 = vmatpush1.msra.mxu0 %v1690
        %1883 = vmatprep.subr.mxu0 %v1697
        %1884 = vmatpush1.msra.mxu0 %v1696
        %1885 = vmatprep.subr.mxu0 %v1703
        %1886 = vmatpush1.msra.mxu0 %v1702
        %1887 = vmatprep.subr.mxu0 %v1709
        %1888 = vmatpush1.msra.mxu0 %v1708
        %1889 = vmatprep.subr.mxu0 %v1715
        %1890 = vmatpush1.msra.mxu0 %v1714
        %1891 = vmatprep.subr.mxu0 %v1721
        %1892 = vmatpush1.msra.mxu0 %v1720
        %1893 = vmatprep.mubr.f32.mxu0 %v1341
        %1894 = vmatmul.mubr.f32.gmra.mrb[0].mxu0 %v1340
        %v1895 = vpop.f32.mrb[0].mxu0
        %v1896 = vadd.f32 %v1825, %v1895
        %v1897 = vpop.f32.mrb[0].mxu0
        %v1898 = vadd.f32 %v1827, %v1897
        %1899 = vdwg.mxu0
        %1900 = vmatprep.subr.mxu0 %v1345
        %1901 = vmatpush1.msra.mxu0 %v1344
        %1902 = vmatprep.subr.mxu0 %v1351
        %1903 = vmatpush1.msra.mxu0 %v1350
        %1904 = vmatprep.subr.mxu0 %v1357
        %1905 = vmatpush1.msra.mxu0 %v1356
        %1906 = vmatprep.subr.mxu0 %v1363
        %1907 = vmatpush1.msra.mxu0 %v1362
        %1908 = vmatprep.subr.mxu0 %v1369
        %1909 = vmatpush1.msra.mxu0 %v1368
        %1910 = vmatprep.subr.mxu0 %v1375
        %1911 = vmatpush1.msra.mxu0 %v1374
        %1912 = vmatprep.subr.mxu0 %v1381
        %1913 = vmatpush1.msra.mxu0 %v1380
        %1914 = vmatprep.subr.mxu0 %v1387
        %1915 = vmatpush1.msra.mxu0 %v1386
        %1916 = vmatprep.subr.mxu0 %v1393
        %1917 = vmatpush1.msra.mxu0 %v1392
        %1918 = vmatprep.subr.mxu0 %v1399
        %1919 = vmatpush1.msra.mxu0 %v1398
        %1920 = vmatprep.subr.mxu0 %v1405
        %1921 = vmatpush1.msra.mxu0 %v1404
        %1922 = vmatprep.subr.mxu0 %v1411
        %1923 = vmatpush1.msra.mxu0 %v1410
        %1924 = vmatprep.subr.mxu0 %v1417
        %1925 = vmatpush1.msra.mxu0 %v1416
        %1926 = vmatprep.subr.mxu0 %v1423
        %1927 = vmatpush1.msra.mxu0 %v1422
        %1928 = vmatprep.subr.mxu0 %v1429
        %1929 = vmatpush1.msra.mxu0 %v1428
        %1930 = vmatprep.subr.mxu0 %v1435
        %1931 = vmatpush1.msra.mxu0 %v1434
        %1932 = vmatprep.subr.mxu0 %v1441
        %1933 = vmatpush1.msra.mxu0 %v1440
        %1934 = vmatprep.subr.mxu0 %v1447
        %1935 = vmatpush1.msra.mxu0 %v1446
        %1936 = vmatprep.subr.mxu0 %v1453
        %1937 = vmatpush1.msra.mxu0 %v1452
        %1938 = vmatprep.subr.mxu0 %v1459
        %1939 = vmatpush1.msra.mxu0 %v1458
        %1940 = vmatprep.subr.mxu0 %v1465
        %1941 = vmatpush1.msra.mxu0 %v1464
        %1942 = vmatprep.subr.mxu0 %v1471
        %1943 = vmatpush1.msra.mxu0 %v1470
        %1944 = vmatprep.subr.mxu0 %v1477
        %1945 = vmatpush1.msra.mxu0 %v1476
        %1946 = vmatprep.subr.mxu0 %v1483
        %1947 = vmatpush1.msra.mxu0 %v1482
        %1948 = vmatprep.subr.mxu0 %v1489
        %1949 = vmatpush1.msra.mxu0 %v1488
        %1950 = vmatprep.subr.mxu0 %v1495
        %1951 = vmatpush1.msra.mxu0 %v1494
        %1952 = vmatprep.subr.mxu0 %v1501
        %1953 = vmatpush1.msra.mxu0 %v1500
        %1954 = vmatprep.subr.mxu0 %v1507
        %1955 = vmatpush1.msra.mxu0 %v1506
        %1956 = vmatprep.subr.mxu0 %v1513
        %1957 = vmatpush1.msra.mxu0 %v1512
        %1958 = vmatprep.subr.mxu0 %v1519
        %1959 = vmatpush1.msra.mxu0 %v1518
        %1960 = vmatprep.subr.mxu0 %v1525
        %1961 = vmatpush1.msra.mxu0 %v1524
        %1962 = vmatprep.subr.mxu0 %v1531
        %1963 = vmatpush1.msra.mxu0 %v1530
        %1964 = vmatprep.mubr.f32.mxu0 %v1339
        %1965 = vmatmul.mubr.f32.gmra.mrb[0].mxu0 %v1338
        %v1966 = vpop.f32.mrb[0].mxu0
        %v1967 = vadd.f32 %v1739, %v1966
        %v1968 = vpop.f32.mrb[0].mxu0
        %v1969 = vadd.f32 %v1743, %v1968
        %1970 = vdwg.mxu0
        %1971 = vmatprep.subr.mxu0 %v1537
        %1972 = vmatpush1.msra.mxu0 %v1536
        %1973 = vmatprep.subr.mxu0 %v1543
        %1974 = vmatpush1.msra.mxu0 %v1542
        %1975 = vmatprep.subr.mxu0 %v1549
        %1976 = vmatpush1.msra.mxu0 %v1548
        %1977 = vmatprep.subr.mxu0 %v1555
        %1978 = vmatpush1.msra.mxu0 %v1554
        %1979 = vmatprep.subr.mxu0 %v1561
        %1980 = vmatpush1.msra.mxu0 %v1560
        %1981 = vmatprep.subr.mxu0 %v1567
        %1982 = vmatpush1.msra.mxu0 %v1566
        %1983 = vmatprep.subr.mxu0 %v1573
        %1984 = vmatpush1.msra.mxu0 %v1572
        %1985 = vmatprep.subr.mxu0 %v1579
        %1986 = vmatpush1.msra.mxu0 %v1578
        %1987 = vmatprep.subr.mxu0 %v1585
        %1988 = vmatpush1.msra.mxu0 %v1584
        %1989 = vmatprep.subr.mxu0 %v1591
        %1990 = vmatpush1.msra.mxu0 %v1590
        %1991 = vmatprep.subr.mxu0 %v1597
        %1992 = vmatpush1.msra.mxu0 %v1596
        %1993 = vmatprep.subr.mxu0 %v1603
        %1994 = vmatpush1.msra.mxu0 %v1602
        %1995 = vmatprep.subr.mxu0 %v1609
        %1996 = vmatpush1.msra.mxu0 %v1608
        %1997 = vmatprep.subr.mxu0 %v1615
        %1998 = vmatpush1.msra.mxu0 %v1614
        %1999 = vmatprep.subr.mxu0 %v1621
        %2000 = vmatpush1.msra.mxu0 %v1620
        %2001 = vmatprep.subr.mxu0 %v1627
        %2002 = vmatpush1.msra.mxu0 %v1626
        %2003 = vmatprep.subr.mxu0 %v1633
        %2004 = vmatpush1.msra.mxu0 %v1632
        %2005 = vmatprep.subr.mxu0 %v1639
        %2006 = vmatpush1.msra.mxu0 %v1638
        %2007 = vmatprep.subr.mxu0 %v1645
        %2008 = vmatpush1.msra.mxu0 %v1644
        %2009 = vmatprep.subr.mxu0 %v1651
        %2010 = vmatpush1.msra.mxu0 %v1650
        %2011 = vmatprep.subr.mxu0 %v1657
        %2012 = vmatpush1.msra.mxu0 %v1656
        %2013 = vmatprep.subr.mxu0 %v1663
        %2014 = vmatpush1.msra.mxu0 %v1662
        %2015 = vmatprep.subr.mxu0 %v1669
        %2016 = vmatpush1.msra.mxu0 %v1668
        %2017 = vmatprep.subr.mxu0 %v1675
        %2018 = vmatpush1.msra.mxu0 %v1674
        %2019 = vmatprep.subr.mxu0 %v1681
        %2020 = vmatpush1.msra.mxu0 %v1680
        %2021 = vmatprep.subr.mxu0 %v1687
        %2022 = vmatpush1.msra.mxu0 %v1686
        %2023 = vmatprep.subr.mxu0 %v1693
        %2024 = vmatpush1.msra.mxu0 %v1692
        %2025 = vmatprep.subr.mxu0 %v1699
        %2026 = vmatpush1.msra.mxu0 %v1698
        %2027 = vmatprep.subr.mxu0 %v1705
        %2028 = vmatpush1.msra.mxu0 %v1704
        %2029 = vmatprep.subr.mxu0 %v1711
        %2030 = vmatpush1.msra.mxu0 %v1710
        %2031 = vmatprep.subr.mxu0 %v1717
        %2032 = vmatpush1.msra.mxu0 %v1716
        %2033 = vmatprep.subr.mxu0 %v1723
        %2034 = vmatpush1.msra.mxu0 %v1722
        %2035 = vmatprep.mubr.f32.mxu0 %v1341
        %2036 = vmatmul.mubr.f32.gmra.mrb[0].mxu0 %v1340
        %v2037 = vpop.f32.mrb[0].mxu0
        %v2038 = vadd.f32 %v1967, %v2037
        %v2039 = vpop.f32.mrb[0].mxu0
        %v2040 = vadd.f32 %v1969, %v2039
        %2041 = vdwg.mxu0
        %2042 = vmatprep.subr.mxu0 %v1347
        %2043 = vmatpush1.msra.mxu0 %v1346
        %2044 = vmatprep.subr.mxu0 %v1353
        %2045 = vmatpush1.msra.mxu0 %v1352
        %2046 = vmatprep.subr.mxu0 %v1359
        %2047 = vmatpush1.msra.mxu0 %v1358
        %2048 = vmatprep.subr.mxu0 %v1365
        %2049 = vmatpush1.msra.mxu0 %v1364
        %2050 = vmatprep.subr.mxu0 %v1371
        %2051 = vmatpush1.msra.mxu0 %v1370
        %2052 = vmatprep.subr.mxu0 %v1377
        %2053 = vmatpush1.msra.mxu0 %v1376
        %2054 = vmatprep.subr.mxu0 %v1383
        %2055 = vmatpush1.msra.mxu0 %v1382
        %2056 = vmatprep.subr.mxu0 %v1389
        %2057 = vmatpush1.msra.mxu0 %v1388
        %2058 = vmatprep.subr.mxu0 %v1395
        %2059 = vmatpush1.msra.mxu0 %v1394
        %2060 = vmatprep.subr.mxu0 %v1401
        %2061 = vmatpush1.msra.mxu0 %v1400
        %2062 = vmatprep.subr.mxu0 %v1407
        %2063 = vmatpush1.msra.mxu0 %v1406
        %2064 = vmatprep.subr.mxu0 %v1413
        %2065 = vmatpush1.msra.mxu0 %v1412
        %2066 = vmatprep.subr.mxu0 %v1419
        %2067 = vmatpush1.msra.mxu0 %v1418
        %2068 = vmatprep.subr.mxu0 %v1425
        %2069 = vmatpush1.msra.mxu0 %v1424
        %2070 = vmatprep.subr.mxu0 %v1431
        %2071 = vmatpush1.msra.mxu0 %v1430
        %2072 = vmatprep.subr.mxu0 %v1437
        %2073 = vmatpush1.msra.mxu0 %v1436
        %2074 = vmatprep.subr.mxu0 %v1443
        %2075 = vmatpush1.msra.mxu0 %v1442
        %2076 = vmatprep.subr.mxu0 %v1449
        %2077 = vmatpush1.msra.mxu0 %v1448
        %2078 = vmatprep.subr.mxu0 %v1455
        %2079 = vmatpush1.msra.mxu0 %v1454
        %2080 = vmatprep.subr.mxu0 %v1461
        %2081 = vmatpush1.msra.mxu0 %v1460
        %2082 = vmatprep.subr.mxu0 %v1467
        %2083 = vmatpush1.msra.mxu0 %v1466
        %2084 = vmatprep.subr.mxu0 %v1473
        %2085 = vmatpush1.msra.mxu0 %v1472
        %2086 = vmatprep.subr.mxu0 %v1479
        %2087 = vmatpush1.msra.mxu0 %v1478
        %2088 = vmatprep.subr.mxu0 %v1485
        %2089 = vmatpush1.msra.mxu0 %v1484
        %2090 = vmatprep.subr.mxu0 %v1491
        %2091 = vmatpush1.msra.mxu0 %v1490
        %2092 = vmatprep.subr.mxu0 %v1497
        %2093 = vmatpush1.msra.mxu0 %v1496
        %2094 = vmatprep.subr.mxu0 %v1503
        %2095 = vmatpush1.msra.mxu0 %v1502
        %2096 = vmatprep.subr.mxu0 %v1509
        %2097 = vmatpush1.msra.mxu0 %v1508
        %2098 = vmatprep.subr.mxu0 %v1515
        %2099 = vmatpush1.msra.mxu0 %v1514
        %2100 = vmatprep.subr.mxu0 %v1521
        %2101 = vmatpush1.msra.mxu0 %v1520
        %2102 = vmatprep.subr.mxu0 %v1527
        %2103 = vmatpush1.msra.mxu0 %v1526
        %2104 = vmatprep.subr.mxu0 %v1533
        %2105 = vmatpush1.msra.mxu0 %v1532
        %2106 = vmatprep.mubr.f32.mxu0 %v1339
        %2107 = vmatmul.mubr.f32.gmra.mrb[0].mxu0 %v1338
        %v2108 = vpop.f32.mrb[0].mxu0
        %v2109 = vadd.f32 %v1747, %v2108
        %v2110 = vpop.f32.mrb[0].mxu0
        %v2111 = vadd.f32 %v1751, %v2110
        %2112 = vdwg.mxu0
        %2113 = vmatprep.subr.mxu0 %v1539
        %2114 = vmatpush1.msra.mxu0 %v1538
        %2115 = vmatprep.subr.mxu0 %v1545
        %2116 = vmatpush1.msra.mxu0 %v1544
        %2117 = vmatprep.subr.mxu0 %v1551
        %2118 = vmatpush1.msra.mxu0 %v1550
        %2119 = vmatprep.subr.mxu0 %v1557
        %2120 = vmatpush1.msra.mxu0 %v1556
        %2121 = vmatprep.subr.mxu0 %v1563
        %2122 = vmatpush1.msra.mxu0 %v1562
        %2123 = vmatprep.subr.mxu0 %v1569
        %2124 = vmatpush1.msra.mxu0 %v1568
        %2125 = vmatprep.subr.mxu0 %v1575
        %2126 = vmatpush1.msra.mxu0 %v1574
        %2127 = vmatprep.subr.mxu0 %v1581
        %2128 = vmatpush1.msra.mxu0 %v1580
        %2129 = vmatprep.subr.mxu0 %v1587
        %2130 = vmatpush1.msra.mxu0 %v1586
        %2131 = vmatprep.subr.mxu0 %v1593
        %2132 = vmatpush1.msra.mxu0 %v1592
        %2133 = vmatprep.subr.mxu0 %v1599
        %2134 = vmatpush1.msra.mxu0 %v1598
        %2135 = vmatprep.subr.mxu0 %v1605
        %2136 = vmatpush1.msra.mxu0 %v1604
        %2137 = vmatprep.subr.mxu0 %v1611
        %2138 = vmatpush1.msra.mxu0 %v1610
        %2139 = vmatprep.subr.mxu0 %v1617
        %2140 = vmatpush1.msra.mxu0 %v1616
        %2141 = vmatprep.subr.mxu0 %v1623
        %2142 = vmatpush1.msra.mxu0 %v1622
        %2143 = vmatprep.subr.mxu0 %v1629
        %2144 = vmatpush1.msra.mxu0 %v1628
        %2145 = vmatprep.subr.mxu0 %v1635
        %2146 = vmatpush1.msra.mxu0 %v1634
        %2147 = vmatprep.subr.mxu0 %v1641
        %2148 = vmatpush1.msra.mxu0 %v1640
        %2149 = vmatprep.subr.mxu0 %v1647
        %2150 = vmatpush1.msra.mxu0 %v1646
        %2151 = vmatprep.subr.mxu0 %v1653
        %2152 = vmatpush1.msra.mxu0 %v1652
        %2153 = vmatprep.subr.mxu0 %v1659
        %2154 = vmatpush1.msra.mxu0 %v1658
        %2155 = vmatprep.subr.mxu0 %v1665
        %2156 = vmatpush1.msra.mxu0 %v1664
        %2157 = vmatprep.subr.mxu0 %v1671
        %2158 = vmatpush1.msra.mxu0 %v1670
        %2159 = vmatprep.subr.mxu0 %v1677
        %2160 = vmatpush1.msra.mxu0 %v1676
        %2161 = vmatprep.subr.mxu0 %v1683
        %2162 = vmatpush1.msra.mxu0 %v1682
        %2163 = vmatprep.subr.mxu0 %v1689
        %2164 = vmatpush1.msra.mxu0 %v1688
        %2165 = vmatprep.subr.mxu0 %v1695
        %2166 = vmatpush1.msra.mxu0 %v1694
        %2167 = vmatprep.subr.mxu0 %v1701
        %2168 = vmatpush1.msra.mxu0 %v1700
        %2169 = vmatprep.subr.mxu0 %v1707
        %2170 = vmatpush1.msra.mxu0 %v1706
        %2171 = vmatprep.subr.mxu0 %v1713
        %2172 = vmatpush1.msra.mxu0 %v1712
        %2173 = vmatprep.subr.mxu0 %v1719
        %2174 = vmatpush1.msra.mxu0 %v1718
        %2175 = vmatprep.subr.mxu0 %v1725
        %2176 = vmatpush1.msra.mxu0 %v1724
        %2177 = vmatprep.mubr.f32.mxu0 %v1341
        %2178 = vmatmul.mubr.f32.gmra.mrb[0].mxu0 %v1340
        %v2179 = vpop.f32.mrb[0].mxu0
        %v2180 = vadd.f32 %v2109, %v2179
        %v2181 = vpop.f32.mrb[0].mxu0
        %v2182 = vadd.f32 %v2111, %v2181
        %2183 = vdwg.mxu0
        %v2184 = vmax.f32 %v1896, 0.0
        %v2185 = vmax.f32 %v1898, 0.0
        %v2186 = vmax.f32 %v2038, 0.0
        %v2187 = vmax.f32 %v2040, 0.0
        %v2188 = vmax.f32 %v2180, 0.0
        %v2189 = vmax.f32 %v2182, 0.0
        %v2190 = vld [vmem:[#allocation13] sm:$0xff]
        %v2191 = vld [vmem:[#allocation13 + $0x8] sm:$0xff]
        %v2192 = vld [vmem:[#allocation13 + $0x10] sm:$0xff]
        %v2193 = vld [vmem:[#allocation13 + $0x18] sm:$0xff]
        %v2194 = vld [vmem:[#allocation13 + $0x20] sm:$0xff]
        %v2195 = vld [vmem:[#allocation13 + $0x28] sm:$0xff]
        %v2196 = vld [vmem:[#allocation13 + $0x30] sm:$0xff]
        %v2197 = vld [vmem:[#allocation13 + $0x38] sm:$0xff]
        %v2198 = vld [vmem:[#allocation13 + $0x40] sm:$0xff]
        %v2199 = vld [vmem:[#allocation13 + $0x48] sm:$0xff]
        %v2200 = vld [vmem:[#allocation13 + $0x50] sm:$0xff]
        %v2201 = vld [vmem:[#allocation13 + $0x58] sm:$0xff]
        %v2202 = vld [vmem:[#allocation13 + $0x60] sm:$0xff]
        %v2203 = vld [vmem:[#allocation13 + $0x68] sm:$0xff]
        %v2204 = vld [vmem:[#allocation13 + $0x70] sm:$0xff]
        %v2205 = vld [vmem:[#allocation13 + $0x78] sm:$0xff]
        %v2206 = vld [vmem:[#allocation13 + $0x80] sm:$0xff]
        %v2207 = vld [vmem:[#allocation13 + $0x88] sm:$0xff]
        %v2208 = vld [vmem:[#allocation13 + $0x90] sm:$0xff]
        %v2209 = vld [vmem:[#allocation13 + $0x98] sm:$0xff]
        %v2210 = vld [vmem:[#allocation13 + $0xa0] sm:$0xff]
        %v2211 = vld [vmem:[#allocation13 + $0xa8] sm:$0xff]
        %v2212 = vld [vmem:[#allocation13 + $0xb0] sm:$0xff]
        %v2213 = vld [vmem:[#allocation13 + $0xb8] sm:$0xff]
        %v2214 = vld [vmem:[#allocation13 + $0xc0] sm:$0xff]
        %v2215 = vld [vmem:[#allocation13 + $0xc8] sm:$0xff]
        %v2216 = vld [vmem:[#allocation13 + $0xd0] sm:$0xff]
        %v2217 = vld [vmem:[#allocation13 + $0xd8] sm:$0xff]
        %v2218 = vld [vmem:[#allocation13 + $0xe0] sm:$0xff]
        %v2219 = vld [vmem:[#allocation13 + $0xe8] sm:$0xff]
        %v2220 = vld [vmem:[#allocation13 + $0xf0] sm:$0xff]
        %v2221 = vld [vmem:[#allocation13 + $0xf8] sm:$0xff]
        %v2222 = vld [vmem:[#allocation13 + $0x100] sm:$0xff]
        %v2223 = vld [vmem:[#allocation13 + $0x108] sm:$0xff]
        %v2224 = vld [vmem:[#allocation13 + $0x110] sm:$0xff]
        %v2225 = vld [vmem:[#allocation13 + $0x118] sm:$0xff]
        %v2226 = vld [vmem:[#allocation13 + $0x120] sm:$0xff]
        %v2227 = vld [vmem:[#allocation13 + $0x128] sm:$0xff]
        %v2228 = vld [vmem:[#allocation13 + $0x130] sm:$0xff]
        %v2229 = vld [vmem:[#allocation13 + $0x138] sm:$0xff]
        %v2230 = vld [vmem:[#allocation13 + $0x140] sm:$0xff]
        %v2231 = vld [vmem:[#allocation13 + $0x148] sm:$0xff]
        %v2232 = vld [vmem:[#allocation13 + $0x150] sm:$0xff]
        %v2233 = vld [vmem:[#allocation13 + $0x158] sm:$0xff]
        %v2234 = vld [vmem:[#allocation13 + $0x160] sm:$0xff]
        %v2235 = vld [vmem:[#allocation13 + $0x168] sm:$0xff]
        %v2236 = vld [vmem:[#allocation13 + $0x170] sm:$0xff]
        %v2237 = vld [vmem:[#allocation13 + $0x178] sm:$0xff]
        %v2238 = vld [vmem:[#allocation13 + $0x180] sm:$0xff]
        %v2239 = vld [vmem:[#allocation13 + $0x188] sm:$0xff]
        %v2240 = vld [vmem:[#allocation13 + $0x190] sm:$0xff]
        %v2241 = vld [vmem:[#allocation13 + $0x198] sm:$0xff]
        %v2242 = vld [vmem:[#allocation13 + $0x1a0] sm:$0xff]
        %v2243 = vld [vmem:[#allocation13 + $0x1a8] sm:$0xff]
        %v2244 = vld [vmem:[#allocation13 + $0x1b0] sm:$0xff]
        %v2245 = vld [vmem:[#allocation13 + $0x1b8] sm:$0xff]
        %v2246 = vld [vmem:[#allocation13 + $0x1c0] sm:$0xff]
        %v2247 = vld [vmem:[#allocation13 + $0x1c8] sm:$0xff]
        %v2248 = vld [vmem:[#allocation13 + $0x1d0] sm:$0xff]
        %v2249 = vld [vmem:[#allocation13 + $0x1d8] sm:$0xff]
        %v2250 = vld [vmem:[#allocation13 + $0x1e0] sm:$0xff]
        %v2251 = vld [vmem:[#allocation13 + $0x1e8] sm:$0xff]
        %v2252 = vld [vmem:[#allocation13 + $0x1f0] sm:$0xff]
        %v2253 = vld [vmem:[#allocation13 + $0x1f8] sm:$0xff]
        %v2254 = vld [vmem:[#allocation13 + $0x200] sm:$0xff]
        %v2255 = vld [vmem:[#allocation13 + $0x208] sm:$0xff]
        %v2256 = vld [vmem:[#allocation13 + $0x210] sm:$0xff]
        %v2257 = vld [vmem:[#allocation13 + $0x218] sm:$0xff]
        %v2258 = vld [vmem:[#allocation13 + $0x220] sm:$0xff]
        %v2259 = vld [vmem:[#allocation13 + $0x228] sm:$0xff]
        %v2260 = vld [vmem:[#allocation13 + $0x230] sm:$0xff]
        %v2261 = vld [vmem:[#allocation13 + $0x238] sm:$0xff]
        %v2262 = vld [vmem:[#allocation13 + $0x240] sm:$0xff]
        %v2263 = vld [vmem:[#allocation13 + $0x248] sm:$0xff]
        %v2264 = vld [vmem:[#allocation13 + $0x250] sm:$0xff]
        %v2265 = vld [vmem:[#allocation13 + $0x258] sm:$0xff]
        %v2266 = vld [vmem:[#allocation13 + $0x260] sm:$0xff]
        %v2267 = vld [vmem:[#allocation13 + $0x268] sm:$0xff]
        %v2268 = vld [vmem:[#allocation13 + $0x270] sm:$0xff]
        %v2269 = vld [vmem:[#allocation13 + $0x278] sm:$0xff]
        %v2270 = vld [vmem:[#allocation13 + $0x280] sm:$0xff]
        %v2271 = vld [vmem:[#allocation13 + $0x288] sm:$0xff]
        %v2272 = vld [vmem:[#allocation13 + $0x290] sm:$0xff]
        %v2273 = vld [vmem:[#allocation13 + $0x298] sm:$0xff]
        %v2274 = vld [vmem:[#allocation13 + $0x2a0] sm:$0xff]
        %v2275 = vld [vmem:[#allocation13 + $0x2a8] sm:$0xff]
        %v2276 = vld [vmem:[#allocation13 + $0x2b0] sm:$0xff]
        %v2277 = vld [vmem:[#allocation13 + $0x2b8] sm:$0xff]
        %v2278 = vld [vmem:[#allocation13 + $0x2c0] sm:$0xff]
        %v2279 = vld [vmem:[#allocation13 + $0x2c8] sm:$0xff]
        %v2280 = vld [vmem:[#allocation13 + $0x2d0] sm:$0xff]
        %v2281 = vld [vmem:[#allocation13 + $0x2d8] sm:$0xff]
        %v2282 = vld [vmem:[#allocation13 + $0x2e0] sm:$0xff]
        %v2283 = vld [vmem:[#allocation13 + $0x2e8] sm:$0xff]
        %v2284 = vld [vmem:[#allocation13 + $0x2f0] sm:$0xff]
        %v2285 = vld [vmem:[#allocation13 + $0x2f8] sm:$0xff]
        %v2286 = vld [vmem:[#allocation14] sm:$0x1]
        %v2288 = vlaneseq
        %v2289 = vshrl.u32 %v2288, 7
        %v2290 = vsub.s32 0, %v2289
        %v2291 = vrot.slane %v2286, %v2290
        %2293 = vmatprep.subr.mxu0 0.0
        %2294 = vmatpush1.msra.mxu0 %v2190
        %2295 = vmatprep.subr.mxu0 0.0
        %2296 = vmatpush1.msra.mxu0 %v2191
        %2297 = vmatprep.subr.mxu0 0.0
        %2298 = vmatpush1.msra.mxu0 %v2192
        %2299 = vmatprep.subr.mxu0 0.0
        %2300 = vmatpush1.msra.mxu0 %v2193
        %2301 = vmatprep.subr.mxu0 0.0
        %2302 = vmatpush1.msra.mxu0 %v2194
        %2303 = vmatprep.subr.mxu0 0.0
        %2304 = vmatpush1.msra.mxu0 %v2195
        %2305 = vmatprep.subr.mxu0 0.0
        %2306 = vmatpush1.msra.mxu0 %v2196
        %2307 = vmatprep.subr.mxu0 0.0
        %2308 = vmatpush1.msra.mxu0 %v2197
        %2309 = vmatprep.subr.mxu0 0.0
        %2310 = vmatpush1.msra.mxu0 %v2198
        %2311 = vmatprep.subr.mxu0 0.0
        %2312 = vmatpush1.msra.mxu0 %v2199
        %2313 = vmatprep.subr.mxu0 0.0
        %2314 = vmatpush1.msra.mxu0 %v2200
        %2315 = vmatprep.subr.mxu0 0.0
        %2316 = vmatpush1.msra.mxu0 %v2201
        %2317 = vmatprep.subr.mxu0 0.0
        %2318 = vmatpush1.msra.mxu0 %v2202
        %2319 = vmatprep.subr.mxu0 0.0
        %2320 = vmatpush1.msra.mxu0 %v2203
        %2321 = vmatprep.subr.mxu0 0.0
        %2322 = vmatpush1.msra.mxu0 %v2204
        %2323 = vmatprep.subr.mxu0 0.0
        %2324 = vmatpush1.msra.mxu0 %v2205
        %2325 = vmatprep.subr.mxu0 0.0
        %2326 = vmatpush1.msra.mxu0 %v2206
        %2327 = vmatprep.subr.mxu0 0.0
        %2328 = vmatpush1.msra.mxu0 %v2207
        %2329 = vmatprep.subr.mxu0 0.0
        %2330 = vmatpush1.msra.mxu0 %v2208
        %2331 = vmatprep.subr.mxu0 0.0
        %2332 = vmatpush1.msra.mxu0 %v2209
        %2333 = vmatprep.subr.mxu0 0.0
        %2334 = vmatpush1.msra.mxu0 %v2210
        %2335 = vmatprep.subr.mxu0 0.0
        %2336 = vmatpush1.msra.mxu0 %v2211
        %2337 = vmatprep.subr.mxu0 0.0
        %2338 = vmatpush1.msra.mxu0 %v2212
        %2339 = vmatprep.subr.mxu0 0.0
        %2340 = vmatpush1.msra.mxu0 %v2213
        %2341 = vmatprep.subr.mxu0 0.0
        %2342 = vmatpush1.msra.mxu0 %v2214
        %2343 = vmatprep.subr.mxu0 0.0
        %2344 = vmatpush1.msra.mxu0 %v2215
        %2345 = vmatprep.subr.mxu0 0.0
        %2346 = vmatpush1.msra.mxu0 %v2216
        %2347 = vmatprep.subr.mxu0 0.0
        %2348 = vmatpush1.msra.mxu0 %v2217
        %2349 = vmatprep.subr.mxu0 0.0
        %2350 = vmatpush1.msra.mxu0 %v2218
        %2351 = vmatprep.subr.mxu0 0.0
        %2352 = vmatpush1.msra.mxu0 %v2219
        %2353 = vmatprep.subr.mxu0 0.0
        %2354 = vmatpush1.msra.mxu0 %v2220
        %2355 = vmatprep.subr.mxu0 0.0
        %2356 = vmatpush1.msra.mxu0 %v2221
        %2357 = vmatprep.mubr.f32.mxu0 %v2185
        %2358 = vmatmul.mubr.f32.gmra.mrb[0].mxu0 %v2184
        %v2359 = vpop.f32.mrb[0].mxu0
        %v2360 = vadd.f32 %v2291, %v2359
        %v2361 = vpop.f32.mrb[0].mxu0
        %2362 = vdwg.mxu0
        %2363 = vmatprep.subr.mxu0 0.0
        %2364 = vmatpush1.msra.mxu0 %v2222
        %2365 = vmatprep.subr.mxu0 0.0
        %2366 = vmatpush1.msra.mxu0 %v2223
        %2367 = vmatprep.subr.mxu0 0.0
        %2368 = vmatpush1.msra.mxu0 %v2224
        %2369 = vmatprep.subr.mxu0 0.0
        %2370 = vmatpush1.msra.mxu0 %v2225
        %2371 = vmatprep.subr.mxu0 0.0
        %2372 = vmatpush1.msra.mxu0 %v2226
        %2373 = vmatprep.subr.mxu0 0.0
        %2374 = vmatpush1.msra.mxu0 %v2227
        %2375 = vmatprep.subr.mxu0 0.0
        %2376 = vmatpush1.msra.mxu0 %v2228
        %2377 = vmatprep.subr.mxu0 0.0
        %2378 = vmatpush1.msra.mxu0 %v2229
        %2379 = vmatprep.subr.mxu0 0.0
        %2380 = vmatpush1.msra.mxu0 %v2230
        %2381 = vmatprep.subr.mxu0 0.0
        %2382 = vmatpush1.msra.mxu0 %v2231
        %2383 = vmatprep.subr.mxu0 0.0
        %2384 = vmatpush1.msra.mxu0 %v2232
        %2385 = vmatprep.subr.mxu0 0.0
        %2386 = vmatpush1.msra.mxu0 %v2233
        %2387 = vmatprep.subr.mxu0 0.0
        %2388 = vmatpush1.msra.mxu0 %v2234
        %2389 = vmatprep.subr.mxu0 0.0
        %2390 = vmatpush1.msra.mxu0 %v2235
        %2391 = vmatprep.subr.mxu0 0.0
        %2392 = vmatpush1.msra.mxu0 %v2236
        %2393 = vmatprep.subr.mxu0 0.0
        %2394 = vmatpush1.msra.mxu0 %v2237
        %2395 = vmatprep.subr.mxu0 0.0
        %2396 = vmatpush1.msra.mxu0 %v2238
        %2397 = vmatprep.subr.mxu0 0.0
        %2398 = vmatpush1.msra.mxu0 %v2239
        %2399 = vmatprep.subr.mxu0 0.0
        %2400 = vmatpush1.msra.mxu0 %v2240
        %2401 = vmatprep.subr.mxu0 0.0
        %2402 = vmatpush1.msra.mxu0 %v2241
        %2403 = vmatprep.subr.mxu0 0.0
        %2404 = vmatpush1.msra.mxu0 %v2242
        %2405 = vmatprep.subr.mxu0 0.0
        %2406 = vmatpush1.msra.mxu0 %v2243
        %2407 = vmatprep.subr.mxu0 0.0
        %2408 = vmatpush1.msra.mxu0 %v2244
        %2409 = vmatprep.subr.mxu0 0.0
        %2410 = vmatpush1.msra.mxu0 %v2245
        %2411 = vmatprep.subr.mxu0 0.0
        %2412 = vmatpush1.msra.mxu0 %v2246
        %2413 = vmatprep.subr.mxu0 0.0
        %2414 = vmatpush1.msra.mxu0 %v2247
        %2415 = vmatprep.subr.mxu0 0.0
        %2416 = vmatpush1.msra.mxu0 %v2248
        %2417 = vmatprep.subr.mxu0 0.0
        %2418 = vmatpush1.msra.mxu0 %v2249
        %2419 = vmatprep.subr.mxu0 0.0
        %2420 = vmatpush1.msra.mxu0 %v2250
        %2421 = vmatprep.subr.mxu0 0.0
        %2422 = vmatpush1.msra.mxu0 %v2251
        %2423 = vmatprep.subr.mxu0 0.0
        %2424 = vmatpush1.msra.mxu0 %v2252
        %2425 = vmatprep.subr.mxu0 0.0
        %2426 = vmatpush1.msra.mxu0 %v2253
        %2427 = vmatprep.mubr.f32.mxu0 %v2187
        %2428 = vmatmul.mubr.f32.gmra.mrb[0].mxu0 %v2186
        %v2429 = vpop.f32.mrb[0].mxu0
        %v2430 = vadd.f32 %v2360, %v2429
        %v2431 = vpop.f32.mrb[0].mxu0
        %2432 = vdwg.mxu0
        %2433 = vmatprep.subr.mxu0 0.0
        %2434 = vmatpush1.msra.mxu0 %v2254
        %2435 = vmatprep.subr.mxu0 0.0
        %2436 = vmatpush1.msra.mxu0 %v2255
        %2437 = vmatprep.subr.mxu0 0.0
        %2438 = vmatpush1.msra.mxu0 %v2256
        %2439 = vmatprep.subr.mxu0 0.0
        %2440 = vmatpush1.msra.mxu0 %v2257
        %2441 = vmatprep.subr.mxu0 0.0
        %2442 = vmatpush1.msra.mxu0 %v2258
        %2443 = vmatprep.subr.mxu0 0.0
        %2444 = vmatpush1.msra.mxu0 %v2259
        %2445 = vmatprep.subr.mxu0 0.0
        %2446 = vmatpush1.msra.mxu0 %v2260
        %2447 = vmatprep.subr.mxu0 0.0
        %2448 = vmatpush1.msra.mxu0 %v2261
        %2449 = vmatprep.subr.mxu0 0.0
        %2450 = vmatpush1.msra.mxu0 %v2262
        %2451 = vmatprep.subr.mxu0 0.0
        %2452 = vmatpush1.msra.mxu0 %v2263
        %2453 = vmatprep.subr.mxu0 0.0
        %2454 = vmatpush1.msra.mxu0 %v2264
        %2455 = vmatprep.subr.mxu0 0.0
        %2456 = vmatpush1.msra.mxu0 %v2265
        %2457 = vmatprep.subr.mxu0 0.0
        %2458 = vmatpush1.msra.mxu0 %v2266
        %2459 = vmatprep.subr.mxu0 0.0
        %2460 = vmatpush1.msra.mxu0 %v2267
        %2461 = vmatprep.subr.mxu0 0.0
        %2462 = vmatpush1.msra.mxu0 %v2268
        %2463 = vmatprep.subr.mxu0 0.0
        %2464 = vmatpush1.msra.mxu0 %v2269
        %2465 = vmatprep.subr.mxu0 0.0
        %2466 = vmatpush1.msra.mxu0 %v2270
        %2467 = vmatprep.subr.mxu0 0.0
        %2468 = vmatpush1.msra.mxu0 %v2271
        %2469 = vmatprep.subr.mxu0 0.0
        %2470 = vmatpush1.msra.mxu0 %v2272
        %2471 = vmatprep.subr.mxu0 0.0
        %2472 = vmatpush1.msra.mxu0 %v2273
        %2473 = vmatprep.subr.mxu0 0.0
        %2474 = vmatpush1.msra.mxu0 %v2274
        %2475 = vmatprep.subr.mxu0 0.0
        %2476 = vmatpush1.msra.mxu0 %v2275
        %2477 = vmatprep.subr.mxu0 0.0
        %2478 = vmatpush1.msra.mxu0 %v2276
        %2479 = vmatprep.subr.mxu0 0.0
        %2480 = vmatpush1.msra.mxu0 %v2277
        %2481 = vmatprep.subr.mxu0 0.0
        %2482 = vmatpush1.msra.mxu0 %v2278
        %2483 = vmatprep.subr.mxu0 0.0
        %2484 = vmatpush1.msra.mxu0 %v2279
        %2485 = vmatprep.subr.mxu0 0.0
        %2486 = vmatpush1.msra.mxu0 %v2280
        %2487 = vmatprep.subr.mxu0 0.0
        %2488 = vmatpush1.msra.mxu0 %v2281
        %2489 = vmatprep.subr.mxu0 0.0
        %2490 = vmatpush1.msra.mxu0 %v2282
        %2491 = vmatprep.subr.mxu0 0.0
        %2492 = vmatpush1.msra.mxu0 %v2283
        %2493 = vmatprep.subr.mxu0 0.0
        %2494 = vmatpush1.msra.mxu0 %v2284
        %2495 = vmatprep.subr.mxu0 0.0
        %2496 = vmatpush1.msra.mxu0 %v2285
        %2497 = vmatprep.mubr.f32.mxu0 %v2189
        %2498 = vmatmul.mubr.f32.gmra.mrb[0].mxu0 %v2188
        %v2499 = vpop.f32.mrb[0].mxu0
        %v2500 = vadd.f32 %v2430, %v2499
        %v2501 = vpop.f32.mrb[0].mxu0
        %2502 = vdwg.mxu0
        %2503 = vst [vmem:[%s418] sm:$0xff] %v2500
        %s2504 = sand.u32 %s210, 1
        %s2505 = scalar_lea.sflag [#allocation4], %s2504
        %s2506 = sand.u32 %s210, 1
        %s2507 = smul.addr %s2506, 8
        %s2508 = scalar_lea.vmem [#allocation16], %s2507
        // Predicated region
        $region85: #{tpu_custom_call.1} parent=51 // pred_check
          %p2509 = pneg %p220
        $region86: #{tpu_custom_call.1} parent=51 // pred_check_branch
          %2511 = sbr.rel (%p2509) target = $region88
        $region87: #{tpu_custom_call.1} parent=51 // pred_region
          %s2513 = ssub.s32 128, 128
          %2514 = vsyncadd %s2505, %s2513
          %s2515 = smul.addr %s29, 128
          %s2516 = scalar_lea.hbm %s8, %s2515
          %s2518 = sshll.u32 %s2508, 4
          %s2519 = int_to_ptr.vmem [resolvable:$true] %s2518
          %2521 = dma.vmem_to_hbm [thread:$0]  %s2519, 128, %s2516, %s2505
        $region88: #{tpu_custom_call.1} parent=51 // pred_fallthru
          _
      $region52: #{tpu_custom_call.1} parent=5 // pred_fallthru
        _
      %p2522 = scmp.le.s32.totalorder 2, %s24
      // Predicated region
      $region89: #{tpu_custom_call.1} parent=5 // pred_check
        %p2523 = pneg %p2522
      $region90: #{tpu_custom_call.1} parent=5 // pred_check_branch
        %2525 = sbr.rel (%p2523) target = $region92
      $region91: #{tpu_custom_call.1} parent=5 // pred_region
        %s2526 = ssub.s32 %s24, 2
        // Predicated region
        $region93: #{tpu_custom_call.1} parent=91 // pred_check
          %p2527 = pneg %p226
        $region94: #{tpu_custom_call.1} parent=91 // pred_check_branch
          %2529 = sbr.rel (%p2527) target = $region96
        $region95: #{tpu_custom_call.1} parent=91 // pred_region
          %s2530 = sand.u32 %s211, 1
          %s2531 = scalar_lea.sflag [#allocation4], %s2530
          %s2532 = sand.u32 %s211, 1
          %s2533 = smul.addr %s2532, 8
          %s2534 = scalar_lea.vmem [#allocation16], %s2533
          %2535 = dma.done %s2531, 128
        $region96: #{tpu_custom_call.1} parent=91 // pred_fallthru
          _
      $region92: #{tpu_custom_call.1} parent=5 // pred_fallthru
        _
    $region6: #{tpu_custom_call.1} parent=1 // loop_footer
      %s28 = sadd.s32 1, %s24
    $region7: #{tpu_custom_call.1} parent=1 // loop_footer_branch
      %23 = sbr.rel target = $region3
    $region8: #{tpu_custom_call.1} parent=1 // loop_exit
      _
    %2536 = vsyncpa [#allocation3], 1
    %s2537 = scalar_lea.sflag [#allocation3], 1
    %2538 = vsyncpa %s2537, 1
    %2539 = vsyncpa [#allocation6], 1
    %2540 = vsyncpa [#allocation9], 1
    %2541 = vsyncpa [#allocation12], 1
    %2542 = vsyncpa [#allocation15], 1
    %2543 = vsyncpa [#allocation4], 1
    %s2544 = scalar_lea.sflag [#allocation4], 1
    %2545 = vsyncpa %s2544, 1

</llo_original>
